<compile_context>
chip_gen: v6e
topology: v6e:2x2x1
jax: 0.10.0
libtpu: 0.0.40
codegen_flags: <defaults>
</compile_context>

<pallas_src>
import numpy as np

import jax
import jax.numpy as jnp
from jax import lax
from jax.experimental import pallas as pl
from jax.experimental.pallas import tpu as pltpu


# --------------------------------------------------------------------------
# Kernel
# --------------------------------------------------------------------------
def _basic_block_kernel(x_ref, m1_ref, m2_ref, b1_ref, b2_ref, o_ref, xp_ref):
    """Whole BasicBlock forward for B_blk images (one grid step).

    x_ref  : (B_blk, H, W*C)          f32   input images, lane-dense rows
    m1_ref : (3, W*C, W*C)            bf16  banded conv1 weights (BN1 folded)
    m2_ref : (3, W*C, W*C)            bf16  banded conv2 weights (BN2 folded)
    b1_ref : (1, W*C)                 f32   BN1 bias, tiled per W position
    b2_ref : (1, W*C)                 f32   BN2 bias, tiled per W position
    o_ref  : (B_blk, H, W*C)          f32   output
    xp_ref : VMEM (B_blk*(H+2), W*C)  f32   stacked H-padded activation scratch
    """
    B, H, WC = x_ref.shape
    S = H + 2                       # per-image row stride in the padded stack
    T = B * S

    # Zero only the 2*B halo rows; interiors are fully overwritten below.
    zero_row = jnp.zeros((1, WC), jnp.float32)
    for b in range(B):
        xp_ref[b * S:b * S + 1, :] = zero_row
        xp_ref[b * S + H + 1:b * S + H + 2, :] = zero_row

    def conv3x3(p, m_ref):
        # p: (T, WC) bf16 padded stack.  acc[j] = sum_kh p[j + kh] @ m[kh];
        # image b's output rows live at acc[b*S : b*S + H]; rows at image
        # seams are junk and are never written back.
        acc = jnp.dot(p[0:T - 2, :], m_ref[0],
                      preferred_element_type=jnp.float32)
        acc = acc + jnp.dot(p[1:T - 1, :], m_ref[1],
                            preferred_element_type=jnp.float32)
        acc = acc + jnp.dot(p[2:T, :], m_ref[2],
                            preferred_element_type=jnp.float32)
        return acc                                       # (T-2, WC) f32

    # ---- conv1 + bn1(bias) + relu ----
    for b in range(B):
        xp_ref[b * S + 1:b * S + 1 + H, :] = x_ref[b]
    p = xp_ref[...].astype(jnp.bfloat16)                 # one cast per conv
    out1 = jnp.maximum(conv3x3(p, m1_ref) + b1_ref[...], 0.0)

    # ---- conv2 + bn2(bias) + residual add + relu (scratch reused) ----
    for b in range(B):
        xp_ref[b * S + 1:b * S + 1 + H, :] = out1[b * S:b * S + H, :]
    p = xp_ref[...].astype(jnp.bfloat16)
    out2 = conv3x3(p, m2_ref) + b2_ref[...]
    for b in range(B):
        # Residual read from the resident x block (no long-lived f32 copy).
        o_ref[b] = jnp.maximum(out2[b * S:b * S + H, :] + x_ref[b], 0.0)


# --------------------------------------------------------------------------
# Wrapper
# --------------------------------------------------------------------------
def _pick_batch_block(n):
    """Largest per-step batch that still leaves >= 2 grid steps (v7x megacore)."""
    want_steps = 2 if n >= 2 else 1
    for b in (8, 4, 2, 1):
        if n % b == 0 and n // b >= want_steps:
            return b
    return 1


@jax.jit
def basic_block_forward(x2, m1, m2, b1, b2):
    """x2: (N, H, W*C) f32; m*: (3, W*C, W*C) bf16; b*: (1, W*C) f32."""
    N, H, WC = x2.shape
    assert m1.shape == (3, WC, WC) and m2.shape == (3, WC, WC)
    b_blk = _pick_batch_block(N)
    steps = N // b_blk
    t_rows = b_blk * (H + 2)

    flops = steps * 2 * 3 * 2 * (t_rows - 2) * WC * WC
    bytes_accessed = (2 * N * H * WC) * 4 + (m1.size + m2.size) * 2 \
        + (b1.size + b2.size) * 4

    return pl.pallas_call(
        _basic_block_kernel,
        out_shape=jax.ShapeDtypeStruct((N, H, WC), jnp.float32),
        grid=(steps,),
        in_specs=[
            pl.BlockSpec((b_blk, H, WC), lambda n: (n, 0, 0)),
            # Constant index maps -> weight/bias blocks stay resident across
            # grid steps (no re-DMA).  ~24 KiB each at the demo size; see the
            # TODO above about re-blocking the band at real ResNet widths.
            pl.BlockSpec((3, WC, WC), lambda n: (0, 0, 0)),
            pl.BlockSpec((3, WC, WC), lambda n: (0, 0, 0)),
            pl.BlockSpec((1, WC), lambda n: (0, 0)),
            pl.BlockSpec((1, WC), lambda n: (0, 0)),
        ],
        out_specs=pl.BlockSpec((b_blk, H, WC), lambda n: (n, 0, 0)),
        scratch_shapes=[pltpu.VMEM((t_rows, WC), jnp.float32)],
        compiler_params=pltpu.CompilerParams(
            dimension_semantics=("parallel",),
            vmem_limit_bytes=32 * 1024 * 1024),
        cost_estimate=pl.CostEstimate(
            flops=flops, transcendentals=0, bytes_accessed=bytes_accessed),
    )(x2, m1, m2, b1, b2)


# --------------------------------------------------------------------------
# Host-side parameter preparation
# --------------------------------------------------------------------------
def fold_bn(gamma, beta, running_mean, running_var, eps=1e-5):
    scale = gamma / jnp.sqrt(running_var + eps)
    bias = beta - running_mean * scale
    return scale, bias


def build_banded_weight(w_oihw, scale, W):
    """OIHW 3x3 conv weight + folded BN scale -> (3, W*Cin, W*Cout) bf16.

    M[kh, wi*Cin + ci, wo*Cout + co] = scale[co] * w[kh, wi-wo+1, ci, co]
    when |wi - wo| <= 1, else 0.  W-direction zero padding is implicit
    (out-of-range taps simply have no band entry).
    """
    Cout, Cin, KH, KW = w_oihw.shape
    w = np.transpose(np.asarray(w_oihw), (2, 3, 1, 0))      # (KH, KW, Cin, Cout)
    w = w * np.asarray(scale)[None, None, None, :]
    M = np.zeros((KH, W, Cin, W, Cout), np.float32)
    for kw in range(KW):
        for wo in range(W):
            wi = wo + kw - 1
            if 0 <= wi < W:
                M[:, wi, :, wo, :] = w[:, kw, :, :]
    return jnp.asarray(M.reshape(KH, W * Cin, W * Cout), dtype=jnp.bfloat16)


def tile_bias(bias, W):
    return jnp.tile(bias, W).reshape(1, W * bias.shape[0]).astype(jnp.float32)


# --------------------------------------------------------------------------
# Pure-JAX reference (f32, PyTorch semantics)
# --------------------------------------------------------------------------
def reference_forward(x_nhwc, w1_hwio, w2_hwio, s1, b1, s2, b2):
    dn = lax.conv_dimension_numbers(x_nhwc.shape, w1_hwio.shape,
                                    ('NHWC', 'HWIO', 'NHWC'))
    out = lax.conv_general_dilated(x_nhwc, w1_hwio, (1, 1), 'SAME',
                                   dimension_numbers=dn)
    out = jnp.maximum(out * s1 + b1, 0.0)
    out = lax.conv_general_dilated(out, w2_hwio, (1, 1), 'SAME',
                                   dimension_numbers=dn)
    return jnp.maximum(out * s2 + b2 + x_nhwc, 0.0)


# --------------------------------------------------------------------------
# Demo / self-test
# --------------------------------------------------------------------------
if __name__ == "__main__":
    # BasicBlock(inplanes=4, planes=4, stride=1, downsample=None)
    # N=8 so the batched grid has 2 parallel steps of 4 images each.
    N, C, H, W = 8, 4, 16, 16
    inplanes = planes = C
    assert inplanes == planes, "downsample=None path requires Cin == Cout"

    key = jax.random.PRNGKey(0)
    kx, kw1, kw2, kg1, kb1, km1, kv1, kg2, kb2, km2, kv2 = jax.random.split(key, 11)

    # Input (PyTorch NCHW convention) -> NHWC -> lane-dense (N, H, W*C).
    x_nchw = jax.random.normal(kx, (N, C, H, W), jnp.float32)
    x_nhwc = jnp.transpose(x_nchw, (0, 2, 3, 1))
    x2 = x_nhwc.reshape(N, H, W * C)

    # Conv weights (PyTorch OIHW layout).
    w1_oihw = jax.random.normal(kw1, (planes, inplanes, 3, 3), jnp.float32) * 0.1
    w2_oihw = jax.random.normal(kw2, (planes, planes, 3, 3), jnp.float32) * 0.1
    w1_hwio = jnp.transpose(w1_oihw, (2, 3, 1, 0))
    w2_hwio = jnp.transpose(w2_oihw, (2, 3, 1, 0))

    # BatchNorm params (inference mode: running stats).
    gamma1 = 1.0 + 0.1 * jax.random.normal(kg1, (planes,), jnp.float32)
    beta1 = 0.1 * jax.random.normal(kb1, (planes,), jnp.float32)
    mean1 = 0.1 * jax.random.normal(km1, (planes,), jnp.float32)
    var1 = jnp.abs(jax.random.normal(kv1, (planes,), jnp.float32)) + 0.5
    gamma2 = 1.0 + 0.1 * jax.random.normal(kg2, (planes,), jnp.float32)
    beta2 = 0.1 * jax.random.normal(kb2, (planes,), jnp.float32)
    mean2 = 0.1 * jax.random.normal(km2, (planes,), jnp.float32)
    var2 = jnp.abs(jax.random.normal(kv2, (planes,), jnp.float32)) + 0.5

    scale1, bias1 = fold_bn(gamma1, beta1, mean1, var1)
    scale2, bias2 = fold_bn(gamma2, beta2, mean2, var2)

    # Host-side weight prep: fold BN scale into banded matmul weights (bf16),
    # tile biases to the lane-dense (1, W*C) layout.
    m1 = build_banded_weight(w1_oihw, scale1, W)
    m2 = build_banded_weight(w2_oihw, scale2, W)
    b1t = tile_bias(bias1, W)
    b2t = tile_bias(bias2, W)

    out2d = basic_block_forward(x2, m1, m2, b1t, b2t)
    out2d = jax.block_until_ready(out2d)
    out_nhwc = out2d.reshape(N, H, W, C)

    ref = reference_forward(x_nhwc, w1_hwio, w2_hwio, scale1, bias1, scale2, bias2)
    # Tolerance accounts for bf16 matmul operands (f32 accumulation).
    assert jnp.allclose(out_nhwc, ref, rtol=5e-2, atol=5e-2), "mismatch vs reference"

    # Back to NCHW for a PyTorch-layout consumer.
    out_nchw = jnp.transpose(out_nhwc, (0, 3, 1, 2))
    assert out_nchw.shape == (N, C, H, W)

    print("KERNEL_OK")
</pallas_src>

<mosaic_0001>
module attributes {stable_mosaic.version = 11 : i64} {
  func.func @_basic_block_kernel(%arg0: i32, %arg1: memref<4x16x64xf32, #tpu.memory_space<vmem>>, %arg2: memref<3x64x64xbf16, #tpu.memory_space<vmem>>, %arg3: memref<3x64x64xbf16, #tpu.memory_space<vmem>>, %arg4: memref<1x64xf32, #tpu.memory_space<vmem>>, %arg5: memref<1x64xf32, #tpu.memory_space<vmem>>, %arg6: memref<4x16x64xf32, #tpu.memory_space<vmem>>, %arg7: memref<72x64xf32, #tpu.memory_space<vmem>>) attributes {dimension_semantics = [#tpu.dimension_semantics<parallel>], iteration_bounds = array<i64: 2>, scalar_prefetch = 0 : i64, scratch_operands = 1 : i64, tpu.core_type = #tpu.core_type<tc>, window_params = [{transform_indices = @transform_0, window_bounds = array<i64: 4, 16, 64>}, {pipeline_mode = #tpu.pipeline_mode<synchronous>, transform_indices = @transform_1, window_bounds = array<i64: 3, 64, 64>}, {pipeline_mode = #tpu.pipeline_mode<synchronous>, transform_indices = @transform_2, window_bounds = array<i64: 3, 64, 64>}, {pipeline_mode = #tpu.pipeline_mode<synchronous>, transform_indices = @transform_3, window_bounds = array<i64: 1, 64>}, {pipeline_mode = #tpu.pipeline_mode<synchronous>, transform_indices = @transform_4, window_bounds = array<i64: 1, 64>}, {transform_indices = @transform_5, window_bounds = array<i64: 4, 16, 64>}]} {
    %cst = arith.constant 0.000000e+00 : f32
    %0 = vector.broadcast %cst : f32 to vector<1x64xf32>
    %c0 = arith.constant 0 : index
    %c0_0 = arith.constant 0 : index
    %1 = vector.load %arg7[%c0, %c0_0] : memref<72x64xf32, #tpu.memory_space<vmem>>, vector<1x64xf32>
    tpu.vector_store %arg7[%c0, %c0_0], %0 {strides = array<i32>} : memref<72x64xf32, #tpu.memory_space<vmem>>, vector<1x64xf32>,
    %c17 = arith.constant 17 : index
    %c0_1 = arith.constant 0 : index
    %2 = vector.load %arg7[%c17, %c0_1] : memref<72x64xf32, #tpu.memory_space<vmem>>, vector<1x64xf32>
    tpu.vector_store %arg7[%c17, %c0_1], %0 {strides = array<i32>} : memref<72x64xf32, #tpu.memory_space<vmem>>, vector<1x64xf32>,
    %c18 = arith.constant 18 : index
    %c0_2 = arith.constant 0 : index
    %3 = vector.load %arg7[%c18, %c0_2] : memref<72x64xf32, #tpu.memory_space<vmem>>, vector<1x64xf32>
    tpu.vector_store %arg7[%c18, %c0_2], %0 {strides = array<i32>} : memref<72x64xf32, #tpu.memory_space<vmem>>, vector<1x64xf32>,
    %c35 = arith.constant 35 : index
    %c0_3 = arith.constant 0 : index
    %4 = vector.load %arg7[%c35, %c0_3] : memref<72x64xf32, #tpu.memory_space<vmem>>, vector<1x64xf32>
    tpu.vector_store %arg7[%c35, %c0_3], %0 {strides = array<i32>} : memref<72x64xf32, #tpu.memory_space<vmem>>, vector<1x64xf32>,
    %c36 = arith.constant 36 : index
    %c0_4 = arith.constant 0 : index
    %5 = vector.load %arg7[%c36, %c0_4] : memref<72x64xf32, #tpu.memory_space<vmem>>, vector<1x64xf32>
    tpu.vector_store %arg7[%c36, %c0_4], %0 {strides = array<i32>} : memref<72x64xf32, #tpu.memory_space<vmem>>, vector<1x64xf32>,
    %c53 = arith.constant 53 : index
    %c0_5 = arith.constant 0 : index
    %6 = vector.load %arg7[%c53, %c0_5] : memref<72x64xf32, #tpu.memory_space<vmem>>, vector<1x64xf32>
    tpu.vector_store %arg7[%c53, %c0_5], %0 {strides = array<i32>} : memref<72x64xf32, #tpu.memory_space<vmem>>, vector<1x64xf32>,
    %c54 = arith.constant 54 : index
    %c0_6 = arith.constant 0 : index
    %7 = vector.load %arg7[%c54, %c0_6] : memref<72x64xf32, #tpu.memory_space<vmem>>, vector<1x64xf32>
    tpu.vector_store %arg7[%c54, %c0_6], %0 {strides = array<i32>} : memref<72x64xf32, #tpu.memory_space<vmem>>, vector<1x64xf32>,
    %c71 = arith.constant 71 : index
    %c0_7 = arith.constant 0 : index
    %8 = vector.load %arg7[%c71, %c0_7] : memref<72x64xf32, #tpu.memory_space<vmem>>, vector<1x64xf32>
    tpu.vector_store %arg7[%c71, %c0_7], %0 {strides = array<i32>} : memref<72x64xf32, #tpu.memory_space<vmem>>, vector<1x64xf32>,
    %c0_8 = arith.constant 0 : index
    %c0_9 = arith.constant 0 : index
    %c0_10 = arith.constant 0 : index
    %9 = vector.load %arg1[%c0_8, %c0_9, %c0_10] : memref<4x16x64xf32, #tpu.memory_space<vmem>>, vector<1x16x64xf32>
    %10 = vector.shape_cast %9 : vector<1x16x64xf32> to vector<16x64xf32>
    %c1 = arith.constant 1 : index
    %c0_11 = arith.constant 0 : index
    %11 = vector.load %arg7[%c1, %c0_11] : memref<72x64xf32, #tpu.memory_space<vmem>>, vector<16x64xf32>
    tpu.vector_store %arg7[%c1, %c0_11], %10 {strides = array<i32>} : memref<72x64xf32, #tpu.memory_space<vmem>>, vector<16x64xf32>,
    %c1_12 = arith.constant 1 : index
    %c0_13 = arith.constant 0 : index
    %c0_14 = arith.constant 0 : index
    %12 = vector.load %arg1[%c1_12, %c0_13, %c0_14] : memref<4x16x64xf32, #tpu.memory_space<vmem>>, vector<1x16x64xf32>
    %13 = vector.shape_cast %12 : vector<1x16x64xf32> to vector<16x64xf32>
    %c19 = arith.constant 19 : index
    %c0_15 = arith.constant 0 : index
    %14 = vector.load %arg7[%c19, %c0_15] : memref<72x64xf32, #tpu.memory_space<vmem>>, vector<16x64xf32>
    tpu.vector_store %arg7[%c19, %c0_15], %13 {strides = array<i32>} : memref<72x64xf32, #tpu.memory_space<vmem>>, vector<16x64xf32>,
    %c2 = arith.constant 2 : index
    %c0_16 = arith.constant 0 : index
    %c0_17 = arith.constant 0 : index
    %15 = vector.load %arg1[%c2, %c0_16, %c0_17] : memref<4x16x64xf32, #tpu.memory_space<vmem>>, vector<1x16x64xf32>
    %16 = vector.shape_cast %15 : vector<1x16x64xf32> to vector<16x64xf32>
    %c37 = arith.constant 37 : index
    %c0_18 = arith.constant 0 : index
    %17 = vector.load %arg7[%c37, %c0_18] : memref<72x64xf32, #tpu.memory_space<vmem>>, vector<16x64xf32>
    tpu.vector_store %arg7[%c37, %c0_18], %16 {strides = array<i32>} : memref<72x64xf32, #tpu.memory_space<vmem>>, vector<16x64xf32>,
    %c3 = arith.constant 3 : index
    %c0_19 = arith.constant 0 : index
    %c0_20 = arith.constant 0 : index
    %18 = vector.load %arg1[%c3, %c0_19, %c0_20] : memref<4x16x64xf32, #tpu.memory_space<vmem>>, vector<1x16x64xf32>
    %19 = vector.shape_cast %18 : vector<1x16x64xf32> to vector<16x64xf32>
    %c55 = arith.constant 55 : index
    %c0_21 = arith.constant 0 : index
    %20 = vector.load %arg7[%c55, %c0_21] : memref<72x64xf32, #tpu.memory_space<vmem>>, vector<16x64xf32>
    tpu.vector_store %arg7[%c55, %c0_21], %19 {strides = array<i32>} : memref<72x64xf32, #tpu.memory_space<vmem>>, vector<16x64xf32>,
    %c0_22 = arith.constant 0 : index
    %c0_23 = arith.constant 0 : index
    %21 = vector.load %arg7[%c0_22, %c0_23] : memref<72x64xf32, #tpu.memory_space<vmem>>, vector<72x64xf32>
    %22 = arith.truncf %21 : vector<72x64xf32> to vector<72x64xbf16>
    %23 = vector.extract_strided_slice %22 {offsets = [0, 0], sizes = [70, 64], strides = [1, 1]} : vector<72x64xbf16> to vector<70x64xbf16>
    %c0_24 = arith.constant 0 : index
    %c0_25 = arith.constant 0 : index
    %c0_26 = arith.constant 0 : index
    %24 = vector.load %arg2[%c0_24, %c0_25, %c0_26] : memref<3x64x64xbf16, #tpu.memory_space<vmem>>, vector<1x64x64xbf16>
    %25 = vector.shape_cast %24 : vector<1x64x64xbf16> to vector<64x64xbf16>
    %cst_27 = arith.constant dense<0.000000e+00> : vector<70x64xf32>
    %26 = tpu.matmul %23, %25, %cst_27 {dimension_numbers = #tpu.dot_dimension_numbers<[1], [0], [0], [1], [0, 0, 1, 1], [], []>} : vector<70x64xbf16>, vector<64x64xbf16>, vector<70x64xf32> -> vector<70x64xf32>
    %27 = vector.extract_strided_slice %22 {offsets = [1, 0], sizes = [70, 64], strides = [1, 1]} : vector<72x64xbf16> to vector<70x64xbf16>
    %c1_28 = arith.constant 1 : index
    %c0_29 = arith.constant 0 : index
    %c0_30 = arith.constant 0 : index
    %28 = vector.load %arg2[%c1_28, %c0_29, %c0_30] : memref<3x64x64xbf16, #tpu.memory_space<vmem>>, vector<1x64x64xbf16>
    %29 = vector.shape_cast %28 : vector<1x64x64xbf16> to vector<64x64xbf16>
    %cst_31 = arith.constant dense<0.000000e+00> : vector<70x64xf32>
    %30 = tpu.matmul %27, %29, %cst_31 {dimension_numbers = #tpu.dot_dimension_numbers<[1], [0], [0], [1], [0, 0, 1, 1], [], []>} : vector<70x64xbf16>, vector<64x64xbf16>, vector<70x64xf32> -> vector<70x64xf32>
    %31 = arith.addf %26, %30 : vector<70x64xf32>
    %32 = vector.extract_strided_slice %22 {offsets = [2, 0], sizes = [70, 64], strides = [1, 1]} : vector<72x64xbf16> to vector<70x64xbf16>
    %c2_32 = arith.constant 2 : index
    %c0_33 = arith.constant 0 : index
    %c0_34 = arith.constant 0 : index
    %33 = vector.load %arg2[%c2_32, %c0_33, %c0_34] : memref<3x64x64xbf16, #tpu.memory_space<vmem>>, vector<1x64x64xbf16>
    %34 = vector.shape_cast %33 : vector<1x64x64xbf16> to vector<64x64xbf16>
    %cst_35 = arith.constant dense<0.000000e+00> : vector<70x64xf32>
    %35 = tpu.matmul %32, %34, %cst_35 {dimension_numbers = #tpu.dot_dimension_numbers<[1], [0], [0], [1], [0, 0, 1, 1], [], []>} : vector<70x64xbf16>, vector<64x64xbf16>, vector<70x64xf32> -> vector<70x64xf32>
    %36 = arith.addf %31, %35 : vector<70x64xf32>
    %c0_36 = arith.constant 0 : index
    %c0_37 = arith.constant 0 : index
    %37 = vector.load %arg4[%c0_36, %c0_37] : memref<1x64xf32, #tpu.memory_space<vmem>>, vector<1x64xf32>
    %38 = vector.broadcast %37 : vector<1x64xf32> to vector<70x64xf32>
    %39 = arith.addf %36, %38 : vector<70x64xf32>
    %cst_38 = arith.constant 0.000000e+00 : f32
    %40 = vector.broadcast %cst_38 : f32 to vector<70x64xf32>
    %41 = arith.maximumf %39, %40 : vector<70x64xf32>
    %42 = vector.extract_strided_slice %41 {offsets = [0, 0], sizes = [16, 64], strides = [1, 1]} : vector<70x64xf32> to vector<16x64xf32>
    %c1_39 = arith.constant 1 : index
    %c0_40 = arith.constant 0 : index
    %43 = vector.load %arg7[%c1_39, %c0_40] : memref<72x64xf32, #tpu.memory_space<vmem>>, vector<16x64xf32>
    tpu.vector_store %arg7[%c1_39, %c0_40], %42 {strides = array<i32>} : memref<72x64xf32, #tpu.memory_space<vmem>>, vector<16x64xf32>,
    %44 = vector.extract_strided_slice %41 {offsets = [18, 0], sizes = [16, 64], strides = [1, 1]} : vector<70x64xf32> to vector<16x64xf32>
    %c19_41 = arith.constant 19 : index
    %c0_42 = arith.constant 0 : index
    %45 = vector.load %arg7[%c19_41, %c0_42] : memref<72x64xf32, #tpu.memory_space<vmem>>, vector<16x64xf32>
    tpu.vector_store %arg7[%c19_41, %c0_42], %44 {strides = array<i32>} : memref<72x64xf32, #tpu.memory_space<vmem>>, vector<16x64xf32>,
    %46 = vector.extract_strided_slice %41 {offsets = [36, 0], sizes = [16, 64], strides = [1, 1]} : vector<70x64xf32> to vector<16x64xf32>
    %c37_43 = arith.constant 37 : index
    %c0_44 = arith.constant 0 : index
    %47 = vector.load %arg7[%c37_43, %c0_44] : memref<72x64xf32, #tpu.memory_space<vmem>>, vector<16x64xf32>
    tpu.vector_store %arg7[%c37_43, %c0_44], %46 {strides = array<i32>} : memref<72x64xf32, #tpu.memory_space<vmem>>, vector<16x64xf32>,
    %48 = vector.extract_strided_slice %41 {offsets = [54, 0], sizes = [16, 64], strides = [1, 1]} : vector<70x64xf32> to vector<16x64xf32>
    %c55_45 = arith.constant 55 : index
    %c0_46 = arith.constant 0 : index
    %49 = vector.load %arg7[%c55_45, %c0_46] : memref<72x64xf32, #tpu.memory_space<vmem>>, vector<16x64xf32>
    tpu.vector_store %arg7[%c55_45, %c0_46], %48 {strides = array<i32>} : memref<72x64xf32, #tpu.memory_space<vmem>>, vector<16x64xf32>,
    %c0_47 = arith.constant 0 : index
    %c0_48 = arith.constant 0 : index
    %50 = vector.load %arg7[%c0_47, %c0_48] : memref<72x64xf32, #tpu.memory_space<vmem>>, vector<72x64xf32>
    %51 = arith.truncf %50 : vector<72x64xf32> to vector<72x64xbf16>
    %52 = vector.extract_strided_slice %51 {offsets = [0, 0], sizes = [70, 64], strides = [1, 1]} : vector<72x64xbf16> to vector<70x64xbf16>
    %c0_49 = arith.constant 0 : index
    %c0_50 = arith.constant 0 : index
    %c0_51 = arith.constant 0 : index
    %53 = vector.load %arg3[%c0_49, %c0_50, %c0_51] : memref<3x64x64xbf16, #tpu.memory_space<vmem>>, vector<1x64x64xbf16>
    %54 = vector.shape_cast %53 : vector<1x64x64xbf16> to vector<64x64xbf16>
    %cst_52 = arith.constant dense<0.000000e+00> : vector<70x64xf32>
    %55 = tpu.matmul %52, %54, %cst_52 {dimension_numbers = #tpu.dot_dimension_numbers<[1], [0], [0], [1], [0, 0, 1, 1], [], []>} : vector<70x64xbf16>, vector<64x64xbf16>, vector<70x64xf32> -> vector<70x64xf32>
    %56 = vector.extract_strided_slice %51 {offsets = [1, 0], sizes = [70, 64], strides = [1, 1]} : vector<72x64xbf16> to vector<70x64xbf16>
    %c1_53 = arith.constant 1 : index
    %c0_54 = arith.constant 0 : index
    %c0_55 = arith.constant 0 : index
    %57 = vector.load %arg3[%c1_53, %c0_54, %c0_55] : memref<3x64x64xbf16, #tpu.memory_space<vmem>>, vector<1x64x64xbf16>
    %58 = vector.shape_cast %57 : vector<1x64x64xbf16> to vector<64x64xbf16>
    %cst_56 = arith.constant dense<0.000000e+00> : vector<70x64xf32>
    %59 = tpu.matmul %56, %58, %cst_56 {dimension_numbers = #tpu.dot_dimension_numbers<[1], [0], [0], [1], [0, 0, 1, 1], [], []>} : vector<70x64xbf16>, vector<64x64xbf16>, vector<70x64xf32> -> vector<70x64xf32>
    %60 = arith.addf %55, %59 : vector<70x64xf32>
    %61 = vector.extract_strided_slice %51 {offsets = [2, 0], sizes = [70, 64], strides = [1, 1]} : vector<72x64xbf16> to vector<70x64xbf16>
    %c2_57 = arith.constant 2 : index
    %c0_58 = arith.constant 0 : index
    %c0_59 = arith.constant 0 : index
    %62 = vector.load %arg3[%c2_57, %c0_58, %c0_59] : memref<3x64x64xbf16, #tpu.memory_space<vmem>>, vector<1x64x64xbf16>
    %63 = vector.shape_cast %62 : vector<1x64x64xbf16> to vector<64x64xbf16>
    %cst_60 = arith.constant dense<0.000000e+00> : vector<70x64xf32>
    %64 = tpu.matmul %61, %63, %cst_60 {dimension_numbers = #tpu.dot_dimension_numbers<[1], [0], [0], [1], [0, 0, 1, 1], [], []>} : vector<70x64xbf16>, vector<64x64xbf16>, vector<70x64xf32> -> vector<70x64xf32>
    %65 = arith.addf %60, %64 : vector<70x64xf32>
    %c0_61 = arith.constant 0 : index
    %c0_62 = arith.constant 0 : index
    %66 = vector.load %arg5[%c0_61, %c0_62] : memref<1x64xf32, #tpu.memory_space<vmem>>, vector<1x64xf32>
    %67 = vector.broadcast %66 : vector<1x64xf32> to vector<70x64xf32>
    %68 = arith.addf %65, %67 : vector<70x64xf32>
    %69 = vector.extract_strided_slice %68 {offsets = [0, 0], sizes = [16, 64], strides = [1, 1]} : vector<70x64xf32> to vector<16x64xf32>
    %c0_63 = arith.constant 0 : index
    %c0_64 = arith.constant 0 : index
    %c0_65 = arith.constant 0 : index
    %70 = vector.load %arg1[%c0_63, %c0_64, %c0_65] : memref<4x16x64xf32, #tpu.memory_space<vmem>>, vector<1x16x64xf32>
    %71 = vector.shape_cast %70 : vector<1x16x64xf32> to vector<16x64xf32>
    %72 = arith.addf %69, %71 : vector<16x64xf32>
    %cst_66 = arith.constant 0.000000e+00 : f32
    %73 = vector.broadcast %cst_66 : f32 to vector<16x64xf32>
    %74 = arith.maximumf %72, %73 : vector<16x64xf32>
    %c0_67 = arith.constant 0 : index
    %c0_68 = arith.constant 0 : index
    %c0_69 = arith.constant 0 : index
    %75 = vector.load %arg6[%c0_67, %c0_68, %c0_69] : memref<4x16x64xf32, #tpu.memory_space<vmem>>, vector<1x16x64xf32>
    %76 = vector.shape_cast %75 : vector<1x16x64xf32> to vector<16x64xf32>
    %77 = vector.shape_cast %74 : vector<16x64xf32> to vector<1x16x64xf32>
    tpu.vector_store %arg6[%c0_67, %c0_68, %c0_69], %77 {strides = array<i32>} : memref<4x16x64xf32, #tpu.memory_space<vmem>>, vector<1x16x64xf32>,
    %78 = vector.extract_strided_slice %68 {offsets = [18, 0], sizes = [16, 64], strides = [1, 1]} : vector<70x64xf32> to vector<16x64xf32>
    %c1_70 = arith.constant 1 : index
    %c0_71 = arith.constant 0 : index
    %c0_72 = arith.constant 0 : index
    %79 = vector.load %arg1[%c1_70, %c0_71, %c0_72] : memref<4x16x64xf32, #tpu.memory_space<vmem>>, vector<1x16x64xf32>
    %80 = vector.shape_cast %79 : vector<1x16x64xf32> to vector<16x64xf32>
    %81 = arith.addf %78, %80 : vector<16x64xf32>
    %cst_73 = arith.constant 0.000000e+00 : f32
    %82 = vector.broadcast %cst_73 : f32 to vector<16x64xf32>
    %83 = arith.maximumf %81, %82 : vector<16x64xf32>
    %c1_74 = arith.constant 1 : index
    %c0_75 = arith.constant 0 : index
    %c0_76 = arith.constant 0 : index
    %84 = vector.load %arg6[%c1_74, %c0_75, %c0_76] : memref<4x16x64xf32, #tpu.memory_space<vmem>>, vector<1x16x64xf32>
    %85 = vector.shape_cast %84 : vector<1x16x64xf32> to vector<16x64xf32>
    %86 = vector.shape_cast %83 : vector<16x64xf32> to vector<1x16x64xf32>
    tpu.vector_store %arg6[%c1_74, %c0_75, %c0_76], %86 {strides = array<i32>} : memref<4x16x64xf32, #tpu.memory_space<vmem>>, vector<1x16x64xf32>,
    %87 = vector.extract_strided_slice %68 {offsets = [36, 0], sizes = [16, 64], strides = [1, 1]} : vector<70x64xf32> to vector<16x64xf32>
    %c2_77 = arith.constant 2 : index
    %c0_78 = arith.constant 0 : index
    %c0_79 = arith.constant 0 : index
    %88 = vector.load %arg1[%c2_77, %c0_78, %c0_79] : memref<4x16x64xf32, #tpu.memory_space<vmem>>, vector<1x16x64xf32>
    %89 = vector.shape_cast %88 : vector<1x16x64xf32> to vector<16x64xf32>
    %90 = arith.addf %87, %89 : vector<16x64xf32>
    %cst_80 = arith.constant 0.000000e+00 : f32
    %91 = vector.broadcast %cst_80 : f32 to vector<16x64xf32>
    %92 = arith.maximumf %90, %91 : vector<16x64xf32>
    %c2_81 = arith.constant 2 : index
    %c0_82 = arith.constant 0 : index
    %c0_83 = arith.constant 0 : index
    %93 = vector.load %arg6[%c2_81, %c0_82, %c0_83] : memref<4x16x64xf32, #tpu.memory_space<vmem>>, vector<1x16x64xf32>
    %94 = vector.shape_cast %93 : vector<1x16x64xf32> to vector<16x64xf32>
    %95 = vector.shape_cast %92 : vector<16x64xf32> to vector<1x16x64xf32>
    tpu.vector_store %arg6[%c2_81, %c0_82, %c0_83], %95 {strides = array<i32>} : memref<4x16x64xf32, #tpu.memory_space<vmem>>, vector<1x16x64xf32>,
    %96 = vector.extract_strided_slice %68 {offsets = [54, 0], sizes = [16, 64], strides = [1, 1]} : vector<70x64xf32> to vector<16x64xf32>
    %c3_84 = arith.constant 3 : index
    %c0_85 = arith.constant 0 : index
    %c0_86 = arith.constant 0 : index
    %97 = vector.load %arg1[%c3_84, %c0_85, %c0_86] : memref<4x16x64xf32, #tpu.memory_space<vmem>>, vector<1x16x64xf32>
    %98 = vector.shape_cast %97 : vector<1x16x64xf32> to vector<16x64xf32>
    %99 = arith.addf %96, %98 : vector<16x64xf32>
    %cst_87 = arith.constant 0.000000e+00 : f32
    %100 = vector.broadcast %cst_87 : f32 to vector<16x64xf32>
    %101 = arith.maximumf %99, %100 : vector<16x64xf32>
    %c3_88 = arith.constant 3 : index
    %c0_89 = arith.constant 0 : index
    %c0_90 = arith.constant 0 : index
    %102 = vector.load %arg6[%c3_88, %c0_89, %c0_90] : memref<4x16x64xf32, #tpu.memory_space<vmem>>, vector<1x16x64xf32>
    %103 = vector.shape_cast %102 : vector<1x16x64xf32> to vector<16x64xf32>
    %104 = vector.shape_cast %101 : vector<16x64xf32> to vector<1x16x64xf32>
    tpu.vector_store %arg6[%c3_88, %c0_89, %c0_90], %104 {strides = array<i32>} : memref<4x16x64xf32, #tpu.memory_space<vmem>>, vector<1x16x64xf32>,
    return
  }
  func.func @transform_0(%arg0: i32) -> (i32, i32, i32) {
    %c0_i32 = arith.constant 0 : i32
    %c0_i32_0 = arith.constant 0 : i32
    %c0_i32_1 = arith.constant 0 : i32
    return %arg0, %c0_i32, %c0_i32_0 : i32, i32, i32
  }
  func.func @transform_1(%arg0: i32) -> (i32, i32, i32) {
    %c0_i32 = arith.constant 0 : i32
    %c0_i32_0 = arith.constant 0 : i32
    %c0_i32_1 = arith.constant 0 : i32
    %c0_i32_2 = arith.constant 0 : i32
    return %c0_i32, %c0_i32_0, %c0_i32_1 : i32, i32, i32
  }
  func.func @transform_2(%arg0: i32) -> (i32, i32, i32) {
    %c0_i32 = arith.constant 0 : i32
    %c0_i32_0 = arith.constant 0 : i32
    %c0_i32_1 = arith.constant 0 : i32
    %c0_i32_2 = arith.constant 0 : i32
    return %c0_i32, %c0_i32_0, %c0_i32_1 : i32, i32, i32
  }
  func.func @transform_3(%arg0: i32) -> (i32, i32) {
    %c0_i32 = arith.constant 0 : i32
    %c0_i32_0 = arith.constant 0 : i32
    %c0_i32_1 = arith.constant 0 : i32
    return %c0_i32, %c0_i32_0 : i32, i32
  }
  func.func @transform_4(%arg0: i32) -> (i32, i32) {
    %c0_i32 = arith.constant 0 : i32
    %c0_i32_0 = arith.constant 0 : i32
    %c0_i32_1 = arith.constant 0 : i32
    return %c0_i32, %c0_i32_0 : i32, i32
  }
  func.func @transform_5(%arg0: i32) -> (i32, i32, i32) {
    %c0_i32 = arith.constant 0 : i32
    %c0_i32_0 = arith.constant 0 : i32
    %c0_i32_1 = arith.constant 0 : i32
    return %arg0, %c0_i32, %c0_i32_0 : i32, i32, i32
  }
}

</mosaic_0001>

<llo_original>
// kernel: basic_block_forward.1
$region0: #{basic_block_forward.1}
  #allocation0 [shape = 'u32[]', space=smem, size = 0x4, offset = 0x4, fixed_abs, tag = 'smem constant byte address 0x4 - core index']
  #allocation1 [shape = 'u32[144,128]{1,0:T(1,128)}', space=vmem, size = 0x12000, scoped, tag = 'internal scratch']
  #allocation2 [shape = 'f32[72,64]{1,0:T(8,128)}', space=vmem, size = 0x9000, scoped, tag = 'scratch operand']
  %s0 = inlined_call_operand.hbm [shape: f32[8,16,64], index: 0, kind: input, shape index: {}]
  %s1 = inlined_call_operand.hbm [shape: bf16[3,64,64], index: 1, kind: input, shape index: {}]
  %s2 = inlined_call_operand.hbm [shape: bf16[3,64,64], index: 2, kind: input, shape index: {}]
  %s3 = inlined_call_operand.vmem [shape: f32[1,64], index: 3, kind: input, shape index: {}]
  %s4 = inlined_call_operand.vmem [shape: f32[1,64], index: 4, kind: input, shape index: {}]
  %s5 = inlined_call_operand.hbm [shape: f32[8,16,64], index: 5, kind: output, shape index: {}]
  %s6 = sld [smem:[#allocation0]]
  $region65: #{basic_block_forward.1} parent=0
    _
  %s8 = ssub.s32 1, %s6
  %s9 = scalar_select 0, %s8, %s6
  $region1: #{basic_block_forward.1} parent=0
    #allocation3 [shape = 'u8[65536]{0}', space=vmem, size = 0x10000, scoped, tag = 'input window, operand 0']
    #allocation4 [shape = 's32[2]{0}', space=sflag, size = 0x8, scoped, tag = 'scoped memory for basic_block_forward.1']
    #allocation5 [shape = 's32[2]{0}', space=sflag, size = 0x8, scoped, tag = 'scoped memory for basic_block_forward.1']
    #allocation6 [shape = 'u8[49152]{0}', space=vmem, size = 0xc000, scoped, tag = 'input window, operand 1, single buffered']
    #allocation7 [shape = 's32[1]{0}', space=sflag, size = 0x4, scoped, tag = 'scoped memory for basic_block_forward.1']
    #allocation8 [shape = 'u8[49152]{0}', space=vmem, size = 0xc000, scoped, tag = 'input window, operand 2, single buffered']
    #allocation9 [shape = 'u8[65536]{0}', space=vmem, size = 0x10000, scoped, tag = 'output window, operand 0']
    %10 = vsyncpa [#allocation4], 0
    %s11 = scalar_lea.sflag [#allocation4], 1
    %12 = vsyncpa %s11, 0
    %13 = vsyncpa [#allocation7], 0
    %14 = vsyncpa [#allocation5], 0
    %s15 = scalar_lea.sflag [#allocation5], 1
    %16 = vsyncpa %s15, 0
    loop: start=0, step=1, limit=4
    $region2: #{basic_block_forward.1} parent=1 // loop_pre_header
      _
    $region3: #{basic_block_forward.1} parent=1 // loop_header
      %s18 = sphi 0, %s22
      %p19 = scmp.ge.s32.totalorder %s18, 4
      %s28 = sphi 0, %s30
      %s31 = sphi 0, %s28
      %s32 = sphi 0, %s31
      %s48 = sphi 0, %s32
      %s52 = sphi 0, %s52
      %s54 = sphi 0, %s52
      %s55 = sphi 0, %s54
      %s69 = sphi 0, %s55
      %s73 = sphi 0, %s73
      %s75 = sphi 0, %s73
      %s76 = sphi 0, %s75
      %s90 = sphi 0, %s76
      %s94 = sphi 0, %s94
      %s96 = sphi 0, %s94
      %s97 = sphi 0, %s96
      %s111 = sphi 0, %s97
      %s115 = sphi 0, %s115
      %s117 = sphi 0, %s115
      %s118 = sphi 0, %s117
      %s132 = sphi 0, %s118
      %s138 = sphi 0, %s140
      %s141 = sphi 0, %s138
      %s142 = sphi 0, %s141
      %s158 = sphi 0, %s142
    $region4: #{basic_block_forward.1} parent=1 // loop_header_branch
      %21 = sbr.rel (%p19) target = $region8
    $region5: #{basic_block_forward.1} parent=1 // loop_body
      %s23 = ssub.s32 %s18, 1
      %s24 = ssub.s32 %s18, 2
      %s25 = sadd.s32 %s18, 1
      %s26 = ssub.s32 %s18, %s25
      %p27 = scmp.eq.s32.totalorder %s26, 0
      %s29 = sadd.s32 %s28, 1
      %s30 = scalar_select %p27, %s28, %s29
      %p33 = pneg %p27
      %p34 = scmp.eq.s32.totalorder %s18, 1
      %p35 = por %p33, %p34
      %p36 = scmp.ne.s32.totalorder %s28, %s31
      %p37 = scmp.eq.s32.totalorder %s18, 0
      %p38 = por %p36, %p37
      %p39 = scmp.ne.s32.totalorder %s28, %s31
      %p40 = scmp.eq.s32.totalorder %s23, 1
      %p41 = por %p39, %p40
      %p42 = scmp.ne.s32.totalorder %s31, %s32
      %p43 = scmp.eq.s32.totalorder %s23, 0
      %p44 = por %p42, %p43
      %p45 = scmp.ne.s32.totalorder %s31, %s32
      %p46 = scmp.eq.s32.totalorder %s24, 1
      %p47 = por %p45, %p46
      %p49 = scmp.ne.s32.totalorder %s32, %s48
      %p50 = scmp.eq.s32.totalorder %s24, 0
      %p51 = por %p49, %p50
      %s53 = sadd.s32 %s52, 1
      %p56 = scmp.eq.s32.totalorder %s18, 1
      %p57 = scmp.ne.s32.totalorder %s52, %s54
      %p58 = scmp.eq.s32.totalorder %s18, 0
      %p59 = por %p57, %p58
      %p60 = scmp.ne.s32.totalorder %s52, %s54
      %p61 = scmp.eq.s32.totalorder %s23, 1
      %p62 = por %p60, %p61
      %p63 = scmp.ne.s32.totalorder %s54, %s55
      %p64 = scmp.eq.s32.totalorder %s23, 0
      %p65 = por %p63, %p64
      %p66 = scmp.ne.s32.totalorder %s54, %s55
      %p67 = scmp.eq.s32.totalorder %s24, 1
      %p68 = por %p66, %p67
      %p70 = scmp.ne.s32.totalorder %s55, %s69
      %p71 = scmp.eq.s32.totalorder %s24, 0
      %p72 = por %p70, %p71
      %s74 = sadd.s32 %s73, 1
      %p77 = scmp.eq.s32.totalorder %s18, 1
      %p78 = scmp.ne.s32.totalorder %s73, %s75
      %p79 = scmp.eq.s32.totalorder %s18, 0
      %p80 = por %p78, %p79
      %p81 = scmp.ne.s32.totalorder %s73, %s75
      %p82 = scmp.eq.s32.totalorder %s23, 1
      %p83 = por %p81, %p82
      %p84 = scmp.ne.s32.totalorder %s75, %s76
      %p85 = scmp.eq.s32.totalorder %s23, 0
      %p86 = por %p84, %p85
      %p87 = scmp.ne.s32.totalorder %s75, %s76
      %p88 = scmp.eq.s32.totalorder %s24, 1
      %p89 = por %p87, %p88
      %p91 = scmp.ne.s32.totalorder %s76, %s90
      %p92 = scmp.eq.s32.totalorder %s24, 0
      %p93 = por %p91, %p92
      %s95 = sadd.s32 %s94, 1
      %p98 = scmp.eq.s32.totalorder %s18, 1
      %p99 = scmp.ne.s32.totalorder %s94, %s96
      %p100 = scmp.eq.s32.totalorder %s18, 0
      %p101 = por %p99, %p100
      %p102 = scmp.ne.s32.totalorder %s94, %s96
      %p103 = scmp.eq.s32.totalorder %s23, 1
      %p104 = por %p102, %p103
      %p105 = scmp.ne.s32.totalorder %s96, %s97
      %p106 = scmp.eq.s32.totalorder %s23, 0
      %p107 = por %p105, %p106
      %p108 = scmp.ne.s32.totalorder %s96, %s97
      %p109 = scmp.eq.s32.totalorder %s24, 1
      %p110 = por %p108, %p109
      %p112 = scmp.ne.s32.totalorder %s97, %s111
      %p113 = scmp.eq.s32.totalorder %s24, 0
      %p114 = por %p112, %p113
      %s116 = sadd.s32 %s115, 1
      %p119 = scmp.eq.s32.totalorder %s18, 1
      %p120 = scmp.ne.s32.totalorder %s115, %s117
      %p121 = scmp.eq.s32.totalorder %s18, 0
      %p122 = por %p120, %p121
      %p123 = scmp.ne.s32.totalorder %s115, %s117
      %p124 = scmp.eq.s32.totalorder %s23, 1
      %p125 = por %p123, %p124
      %p126 = scmp.ne.s32.totalorder %s117, %s118
      %p127 = scmp.eq.s32.totalorder %s23, 0
      %p128 = por %p126, %p127
      %p129 = scmp.ne.s32.totalorder %s117, %s118
      %p130 = scmp.eq.s32.totalorder %s24, 1
      %p131 = por %p129, %p130
      %p133 = scmp.ne.s32.totalorder %s118, %s132
      %p134 = scmp.eq.s32.totalorder %s24, 0
      %p135 = por %p133, %p134
      %s136 = ssub.s32 %s18, %s25
      %p137 = scmp.eq.s32.totalorder %s136, 0
      %s139 = sadd.s32 %s138, 1
      %s140 = scalar_select %p137, %s138, %s139
      %p143 = pneg %p137
      %p144 = scmp.eq.s32.totalorder %s18, 1
      %p145 = por %p143, %p144
      %p146 = scmp.ne.s32.totalorder %s138, %s141
      %p147 = scmp.eq.s32.totalorder %s18, 0
      %p148 = por %p146, %p147
      %p149 = scmp.ne.s32.totalorder %s138, %s141
      %p150 = scmp.eq.s32.totalorder %s23, 1
      %p151 = por %p149, %p150
      %p152 = scmp.ne.s32.totalorder %s141, %s142
      %p153 = scmp.eq.s32.totalorder %s23, 0
      %p154 = por %p152, %p153
      %p155 = scmp.ne.s32.totalorder %s141, %s142
      %p156 = scmp.eq.s32.totalorder %s24, 1
      %p157 = por %p155, %p156
      %p159 = scmp.ne.s32.totalorder %s142, %s158
      %p160 = scmp.eq.s32.totalorder %s24, 0
      %p161 = por %p159, %p160
      %p162 = scmp.le.s32.totalorder 1, %s18
      %p163 = scmp.lt.s32.totalorder %s18, 3
      %p164 = pnand %p162, %p163
      %p165 = pneg %p164
      // Predicated region
      $region9: #{basic_block_forward.1} parent=5 // pred_check
        _
      $region10: #{basic_block_forward.1} parent=5 // pred_check_branch
        %167 = sbr.rel (%p164) target = $region12
      $region11: #{basic_block_forward.1} parent=5 // pred_region
        %s168 = ssub.s32 %s18, 1
        // Predicated region
        $region13: #{basic_block_forward.1} parent=11 // pred_check
          %p169 = pneg %p65
        $region14: #{basic_block_forward.1} parent=11 // pred_check_branch
          %171 = sbr.rel (%p169) target = $region16
        $region15: #{basic_block_forward.1} parent=11 // pred_region
          %s173 = ssub.s32 1536, 1536
          %174 = vsyncadd [#allocation7], %s173
          %s175 = sshll.u32 [#allocation6], 4
          %s176 = int_to_ptr.vmem [resolvable:$true] %s175
          %181 = dma.hbm_to_vmem [thread:$0]  %s1, 1536, %s176, [#allocation7], 64, 64, 4
        $region16: #{basic_block_forward.1} parent=11 // pred_fallthru
          _
        // Predicated region
        $region17: #{basic_block_forward.1} parent=11 // pred_check
          %p182 = pneg %p86
        $region18: #{basic_block_forward.1} parent=11 // pred_check_branch
          %184 = sbr.rel (%p182) target = $region20
        $region19: #{basic_block_forward.1} parent=11 // pred_region
          %s186 = ssub.s32 1536, 1536
          %187 = vsyncadd [#allocation7], %s186
          %s188 = sshll.u32 [#allocation8], 4
          %s189 = int_to_ptr.vmem [resolvable:$true] %s188
          %194 = dma.hbm_to_vmem [thread:$0]  %s2, 1536, %s189, [#allocation7], 64, 64, 4
        $region20: #{basic_block_forward.1} parent=11 // pred_fallthru
          _
        // Predicated region
        $region21: #{basic_block_forward.1} parent=11 // pred_check
          %p195 = pneg %p107
        $region22: #{basic_block_forward.1} parent=11 // pred_check_branch
          %197 = sbr.rel (%p195) target = $region24
        $region23: #{basic_block_forward.1} parent=11 // pred_region
          _
        $region24: #{basic_block_forward.1} parent=11 // pred_fallthru
          _
        // Predicated region
        $region25: #{basic_block_forward.1} parent=11 // pred_check
          %p198 = pneg %p128
        $region26: #{basic_block_forward.1} parent=11 // pred_check_branch
          %200 = sbr.rel (%p198) target = $region28
        $region27: #{basic_block_forward.1} parent=11 // pred_region
          _
        $region28: #{basic_block_forward.1} parent=11 // pred_fallthru
          _
      $region12: #{basic_block_forward.1} parent=5 // pred_fallthru
        _
      %p201 = scmp.lt.s32.totalorder %s18, 2
      // Predicated region
      $region29: #{basic_block_forward.1} parent=5 // pred_check
        %p202 = pneg %p201
      $region30: #{basic_block_forward.1} parent=5 // pred_check_branch
        %204 = sbr.rel (%p202) target = $region32
      $region31: #{basic_block_forward.1} parent=5 // pred_region
        // Predicated region
        $region33: #{basic_block_forward.1} parent=31 // pred_check
          %p205 = pneg %p38
        $region34: #{basic_block_forward.1} parent=31 // pred_check_branch
          %207 = sbr.rel (%p205) target = $region36
        $region35: #{basic_block_forward.1} parent=31 // pred_region
          %s208 = sand.u32 %s28, 1
          %s209 = scalar_lea.sflag [#allocation4], %s208
          %s210 = sand.u32 %s28, 1
          %s211 = smul.addr %s210, 64
          %s212 = scalar_lea.vmem [#allocation3], %s211
          %s213 = smul.u32 4, %s18
          %s215 = ssub.s32 1024, 1024
          %216 = vsyncadd %s209, %s215
          %s217 = smul.addr %s213, 2
          %s218 = smul.addr %s217, 128
          %s219 = scalar_lea.hbm %s0, %s218
          %s220 = sshll.u32 %s212, 4
          %s221 = int_to_ptr.vmem [resolvable:$true] %s220
          %226 = dma.hbm_to_vmem [thread:$0]  %s219, 1024, %s221, %s209, 128, 128, 8
        $region36: #{basic_block_forward.1} parent=31 // pred_fallthru
          _
      $region32: #{basic_block_forward.1} parent=5 // pred_fallthru
        _
      %p227 = scmp.le.s32.totalorder 1, %s18
      %p228 = scmp.lt.s32.totalorder %s18, 3
      %p229 = pnand %p227, %p228
      %p230 = pneg %p229
      // Predicated region
      $region37: #{basic_block_forward.1} parent=5 // pred_check
        _
      $region38: #{basic_block_forward.1} parent=5 // pred_check_branch
        %232 = sbr.rel (%p229) target = $region40
      $region39: #{basic_block_forward.1} parent=5 // pred_region
        %s233 = ssub.s32 %s18, 1
        %s234 = sand.u32 %s31, 1
        %s235 = scalar_lea.sflag [#allocation4], %s234
        %s236 = sand.u32 %s31, 1
        %s237 = smul.addr %s236, 64
        %s238 = scalar_lea.vmem [#allocation3], %s237
        // Predicated region
        $region41: #{basic_block_forward.1} parent=39 // pred_check
          %p239 = pneg %p44
        $region42: #{basic_block_forward.1} parent=39 // pred_check_branch
          %241 = sbr.rel (%p239) target = $region44
        $region43: #{basic_block_forward.1} parent=39 // pred_region
          %242 = dma.done %s235, 1024
        $region44: #{basic_block_forward.1} parent=39 // pred_fallthru
          _
        // Predicated region
        $region45: #{basic_block_forward.1} parent=39 // pred_check
          %p243 = pneg %p65
        $region46: #{basic_block_forward.1} parent=39 // pred_check_branch
          %245 = sbr.rel (%p243) target = $region48
        $region47: #{basic_block_forward.1} parent=39 // pred_region
          %246 = dma.done [#allocation7], 1536
        $region48: #{basic_block_forward.1} parent=39 // pred_fallthru
          _
        // Predicated region
        $region49: #{basic_block_forward.1} parent=39 // pred_check
          %p247 = pneg %p86
        $region50: #{basic_block_forward.1} parent=39 // pred_check_branch
          %249 = sbr.rel (%p247) target = $region52
        $region51: #{basic_block_forward.1} parent=39 // pred_region
          %250 = dma.done [#allocation7], 1536
        $region52: #{basic_block_forward.1} parent=39 // pred_fallthru
          _
        %s251 = sand.u32 %s31, 1
        %s252 = scalar_lea.sflag [#allocation4], %s251
        %s253 = sand.u32 %s31, 1
        %s254 = smul.addr %s253, 64
        %s255 = scalar_lea.vmem [#allocation3], %s254
        %p256 = pneg %p44
        %p257 = pneg %p41
        %p258 = pneg %p65
        %p259 = pneg %p62
        %p260 = pneg %p86
        %p261 = pneg %p83
        %p262 = pneg %p107
        %p263 = pneg %p104
        %p264 = pneg %p128
        %p265 = pneg %p125
        %p266 = pneg %p154
        %p267 = pneg %p151
        %s268 = sand.u32 %s141, 1
        %s269 = scalar_lea.sflag [#allocation5], %s268
        %s270 = sand.u32 %s141, 1
        %s271 = smul.addr %s270, 64
        %s272 = scalar_lea.vmem [#allocation9], %s271
        %s273 = smul.u32 4, %s23
        %s274 = smul.u32 4, %s23
        %vm276 = vcmask 516096
        %277 = vst.msk [vmem:[#allocation2] sm:$0x1] %vm276, 0.0
        %278 = vst.msk [vmem:[#allocation2 + $0x11] sm:$0x1] %vm276, 0.0
        %279 = vst.msk [vmem:[#allocation2 + $0x12] sm:$0x1] %vm276, 0.0
        %280 = vst.msk [vmem:[#allocation2 + $0x23] sm:$0x1] %vm276, 0.0
        %281 = vst.msk [vmem:[#allocation2 + $0x24] sm:$0x1] %vm276, 0.0
        %282 = vst.msk [vmem:[#allocation2 + $0x35] sm:$0x1] %vm276, 0.0
        %283 = vst.msk [vmem:[#allocation2 + $0x36] sm:$0x1] %vm276, 0.0
        %284 = vst.msk [vmem:[#allocation2 + $0x47] sm:$0x1] %vm276, 0.0
        %v285 = vld [vmem:[%s238] sm:$0xff]
        %v286 = vld [vmem:[%s238 + $0x8] sm:$0xff]
        %vm287 = vcmask 523264
        %288 = vst.msk [vmem:[#allocation2 + $0x1] sm:$0xff] %vm287, %v285
        %289 = vst.msk [vmem:[#allocation2 + $0x9] sm:$0xff] %vm287, %v286
        %s290 = scalar_lea.vmem %s238, 16 [#allocation3]
        %v291 = vld [vmem:[%s290] sm:$0xff]
        %v292 = vld [vmem:[%s290 + $0x8] sm:$0xff]
        %293 = vst.msk [vmem:[#allocation2 + $0x13] sm:$0xff] %vm287, %v291
        %294 = vst.msk [vmem:[#allocation2 + $0x1b] sm:$0xff] %vm287, %v292
        %s295 = scalar_lea.vmem %s238, 32 [#allocation3]
        %v296 = vld [vmem:[%s295] sm:$0xff]
        %v297 = vld [vmem:[%s295 + $0x8] sm:$0xff]
        %298 = vst.msk [vmem:[#allocation2 + $0x25] sm:$0xff] %vm287, %v296
        %299 = vst.msk [vmem:[#allocation2 + $0x2d] sm:$0xff] %vm287, %v297
        %s300 = scalar_lea.vmem %s238, 48 [#allocation3]
        %v301 = vld [vmem:[%s300] sm:$0xff]
        %v302 = vld [vmem:[%s300 + $0x8] sm:$0xff]
        %303 = vst.msk [vmem:[#allocation2 + $0x37] sm:$0xff] %vm287, %v301
        %304 = vst.msk [vmem:[#allocation2 + $0x3f] sm:$0xff] %vm287, %v302
        %v305 = vld [vmem:[#allocation2] sm:$0xff]
        %v306 = vld [vmem:[#allocation2 + $0x8] sm:$0xff]
        %v307 = vld [vmem:[#allocation2 + $0x10] sm:$0xff]
        %v308 = vld [vmem:[#allocation2 + $0x18] sm:$0xff]
        %v309 = vld [vmem:[#allocation2 + $0x20] sm:$0xff]
        %v310 = vld [vmem:[#allocation2 + $0x28] sm:$0xff]
        %v311 = vld [vmem:[#allocation2 + $0x30] sm:$0xff]
        %v312 = vld [vmem:[#allocation2 + $0x38] sm:$0xff]
        %v313 = vld [vmem:[#allocation2 + $0x40] sm:$0xff]
        %v314 = vpack.c.bf16 %v306, %v305
        %v315 = vpack.c.bf16 %v308, %v307
        %v316 = vpack.c.bf16 %v310, %v309
        %v317 = vpack.c.bf16 %v312, %v311
        %v318 = vpack.c.bf16 %v313, %v313
        %v319 = vld [vmem:[#allocation6] sm:$0xf]
        %v320 = vld [vmem:[#allocation6 + $0x4] sm:$0xf]
        %v321 = vld [vmem:[#allocation6 + $0x8] sm:$0xf]
        %v322 = vld [vmem:[#allocation6 + $0xc] sm:$0xf]
        %v323 = vld [vmem:[#allocation6 + $0x10] sm:$0xf]
        %v324 = vld [vmem:[#allocation6 + $0x14] sm:$0xf]
        %v325 = vld [vmem:[#allocation6 + $0x18] sm:$0xf]
        %v326 = vld [vmem:[#allocation6 + $0x1c] sm:$0xf]
        %s327 = scalar_lea.vmem [#allocation6], 32
        %v328 = vld [vmem:[%s327] sm:$0xf]
        %v329 = vld [vmem:[%s327 + $0x4] sm:$0xf]
        %v330 = vld [vmem:[%s327 + $0x8] sm:$0xf]
        %v331 = vld [vmem:[%s327 + $0xc] sm:$0xf]
        %v332 = vld [vmem:[%s327 + $0x10] sm:$0xf]
        %v333 = vld [vmem:[%s327 + $0x14] sm:$0xf]
        %v334 = vld [vmem:[%s327 + $0x18] sm:$0xf]
        %v335 = vld [vmem:[%s327 + $0x1c] sm:$0xf]
        %vm336 = vsmask.f32 7424
        %v338 = vshrl.u32 %v314, 16
        %v340 = vshll.u32 %v314, 16
        %v342 = vrot.slane %v340, 1
        %v343 = vor.u32 %v338, %v342
        %v345 = vshll.u32 %v315, 16
        %v347 = vrot.slane %v345, 1
        %v348 = vsel %vm336, %v343, %v347
        %v349 = vshrl.u32 %v315, 16
        %v351 = vor.u32 %v349, %v347
        %v353 = vshll.u32 %v316, 16
        %v355 = vrot.slane %v353, 1
        %v356 = vsel %vm336, %v351, %v355
        %v357 = vshrl.u32 %v316, 16
        %v359 = vor.u32 %v357, %v355
        %v361 = vshll.u32 %v317, 16
        %v363 = vrot.slane %v361, 1
        %v364 = vsel %vm336, %v359, %v363
        %v365 = vshrl.u32 %v317, 16
        %v367 = vor.u32 %v365, %v363
        %v369 = vshll.u32 %v318, 16
        %v371 = vrot.slane %v369, 1
        %v372 = vsel %vm336, %v367, %v371
        %v373 = vshrl.u32 %v318, 16
        %v375 = vor.u32 %v373, %v371
        %v384 = vunpack.c.l.b16 %v328
        %v385 = vunpack.c.l.b16 %v329
        %v386 = vunpack.c.l.b16 %v330
        %v387 = vunpack.c.l.b16 %v331
        %v388 = vunpack.c.l.b16 %v332
        %v389 = vunpack.c.l.b16 %v333
        %v390 = vunpack.c.l.b16 %v334
        %v391 = vunpack.c.l.b16 %v335
        %v392 = vpack.c.b16 %v385, %v384
        %v393 = vpack.c.b16 %v387, %v386
        %v394 = vpack.c.b16 %v389, %v388
        %v395 = vpack.c.b16 %v391, %v390
        %v401 = vsel %vm287, %v348, 0
        %v404 = vsel %vm287, %v356, 0
        %v407 = vsel %vm287, %v364, 0
        %v410 = vsel %vm287, %v372, 0
        %v413 = vsel %vm287, %v375, 0
        %415 = vmatprep.subr.bf16.mxu0 0
        %416 = vmatpush1.bf16.msra.mxu0 0
        %417 = vmatprep.subr.bf16.mxu0 0
        %418 = vmatpush1.bf16.msra.mxu0 0
        %419 = vmatprep.subr.bf16.mxu0 0
        %420 = vmatpush1.bf16.msra.mxu0 0
        %421 = vmatprep.subr.bf16.mxu0 0
        %422 = vmatpush1.bf16.msra.mxu0 0
        %423 = vmatprep.subr.bf16.mxu0 0
        %424 = vmatpush1.bf16.msra.mxu0 %v395
        %425 = vmatprep.subr.bf16.mxu0 0
        %426 = vmatpush1.bf16.msra.mxu0 %v394
        %427 = vmatprep.subr.bf16.mxu0 0
        %428 = vmatpush1.bf16.msra.mxu0 %v393
        %429 = vmatprep.subr.bf16.mxu0 0
        %430 = vmatpush1.bf16.msra.mxu0 %v392
        %431 = vmatprep.subr.bf16.mxu0 0
        %432 = vmatpush2.bf16.msra.mxu0 0
        %433 = vmatprep.subr.bf16.mxu0 0
        %434 = vmatpush2.bf16.msra.mxu0 0
        %435 = vmatprep.subr.bf16.mxu0 0
        %436 = vmatpush2.bf16.msra.mxu0 0
        %437 = vmatprep.subr.bf16.mxu0 0
        %438 = vmatpush2.bf16.msra.mxu0 0
        %439 = vmatprep.subr.bf16.mxu0 0
        %440 = vmatpush2.bf16.msra.mxu0 0
        %441 = vmatprep.subr.bf16.mxu0 0
        %442 = vmatpush2.bf16.msra.mxu0 0
        %443 = vmatprep.subr.bf16.mxu0 0
        %444 = vmatpush2.bf16.msra.mxu0 0
        %445 = vmatprep.subr.bf16.mxu0 0
        %446 = vmatpush2.bf16.msra.mxu0 0
        %447 = vmatprep.mubr.bf16.mxu0 0
        %448 = vmatmul.mubr.bf16.gmra.mxu0 %v401
        %v449 = vpop.f32.mrf.mxu0
        %v450 = vadd.f32 0.0, %v449
        %v451 = vpop.f32.mrf.mxu0
        %v452 = vpop.f32.mrf.mxu0
        %v453 = vadd.f32 0.0, %v452
        %v454 = vpop.f32.mrf.mxu0
        %455 = vmatprep.mubr.bf16.mxu0 0
        %456 = vmatmul.mubr.bf16.gmra.mxu0 %v404
        %v457 = vpop.f32.mrf.mxu0
        %v458 = vadd.f32 0.0, %v457
        %v459 = vpop.f32.mrf.mxu0
        %v460 = vpop.f32.mrf.mxu0
        %v461 = vadd.f32 0.0, %v460
        %v462 = vpop.f32.mrf.mxu0
        %463 = vmatprep.mubr.bf16.mxu0 0
        %464 = vmatmul.mubr.bf16.gmra.mxu0 %v407
        %v465 = vpop.f32.mrf.mxu0
        %v466 = vadd.f32 0.0, %v465
        %v467 = vpop.f32.mrf.mxu0
        %v468 = vpop.f32.mrf.mxu0
        %v469 = vadd.f32 0.0, %v468
        %v470 = vpop.f32.mrf.mxu0
        %471 = vmatprep.mubr.bf16.mxu0 0
        %472 = vmatmul.mubr.bf16.gmra.mxu0 %v410
        %v473 = vpop.f32.mrf.mxu0
        %v474 = vadd.f32 0.0, %v473
        %v475 = vpop.f32.mrf.mxu0
        %v476 = vpop.f32.mrf.mxu0
        %v477 = vadd.f32 0.0, %v476
        %v478 = vpop.f32.mrf.mxu0
        %479 = vmatprep.mubr.bf16.mxu0 0
        %480 = vmatmul.mubr.bf16.gmra.mxu0 %v413
        %v481 = vpop.f32.mrf.mxu0
        %v482 = vadd.f32 0.0, %v481
        %v483 = vpop.f32.mrf.mxu0
        %v484 = vpop.f32.mrf.mxu0
        %v485 = vpop.f32.mrf.mxu0
        %486 = vdwg.mxu0
        %v495 = vunpack.c.l.b16 %v319
        %v496 = vunpack.c.l.b16 %v320
        %v497 = vunpack.c.l.b16 %v321
        %v498 = vunpack.c.l.b16 %v322
        %v499 = vunpack.c.l.b16 %v323
        %v500 = vunpack.c.l.b16 %v324
        %v501 = vunpack.c.l.b16 %v325
        %v502 = vunpack.c.l.b16 %v326
        %v503 = vpack.c.b16 %v496, %v495
        %v504 = vpack.c.b16 %v498, %v497
        %v505 = vpack.c.b16 %v500, %v499
        %v506 = vpack.c.b16 %v502, %v501
        %v511 = vsel %vm287, %v314, 0
        %v513 = vsel %vm287, %v315, 0
        %v515 = vsel %vm287, %v316, 0
        %v517 = vsel %vm287, %v317, 0
        %v519 = vsel %vm287, %v318, 0
        %521 = vmatprep.subr.bf16.mxu0 0
        %522 = vmatpush1.bf16.msra.mxu0 0
        %523 = vmatprep.subr.bf16.mxu0 0
        %524 = vmatpush1.bf16.msra.mxu0 0
        %525 = vmatprep.subr.bf16.mxu0 0
        %526 = vmatpush1.bf16.msra.mxu0 0
        %527 = vmatprep.subr.bf16.mxu0 0
        %528 = vmatpush1.bf16.msra.mxu0 0
        %529 = vmatprep.subr.bf16.mxu0 0
        %530 = vmatpush1.bf16.msra.mxu0 %v506
        %531 = vmatprep.subr.bf16.mxu0 0
        %532 = vmatpush1.bf16.msra.mxu0 %v505
        %533 = vmatprep.subr.bf16.mxu0 0
        %534 = vmatpush1.bf16.msra.mxu0 %v504
        %535 = vmatprep.subr.bf16.mxu0 0
        %536 = vmatpush1.bf16.msra.mxu0 %v503
        %537 = vmatprep.subr.bf16.mxu0 0
        %538 = vmatpush2.bf16.msra.mxu0 0
        %539 = vmatprep.subr.bf16.mxu0 0
        %540 = vmatpush2.bf16.msra.mxu0 0
        %541 = vmatprep.subr.bf16.mxu0 0
        %542 = vmatpush2.bf16.msra.mxu0 0
        %543 = vmatprep.subr.bf16.mxu0 0
        %544 = vmatpush2.bf16.msra.mxu0 0
        %545 = vmatprep.subr.bf16.mxu0 0
        %546 = vmatpush2.bf16.msra.mxu0 0
        %547 = vmatprep.subr.bf16.mxu0 0
        %548 = vmatpush2.bf16.msra.mxu0 0
        %549 = vmatprep.subr.bf16.mxu0 0
        %550 = vmatpush2.bf16.msra.mxu0 0
        %551 = vmatprep.subr.bf16.mxu0 0
        %552 = vmatpush2.bf16.msra.mxu0 0
        %553 = vmatprep.mubr.bf16.mxu0 0
        %554 = vmatmul.mubr.bf16.gmra.mxu0 %v511
        %v555 = vpop.f32.mrf.mxu0
        %v556 = vadd.f32 %v450, %v555
        %v557 = vpop.f32.mrf.mxu0
        %v558 = vpop.f32.mrf.mxu0
        %v559 = vadd.f32 %v453, %v558
        %v560 = vpop.f32.mrf.mxu0
        %561 = vmatprep.mubr.bf16.mxu0 0
        %562 = vmatmul.mubr.bf16.gmra.mxu0 %v513
        %v563 = vpop.f32.mrf.mxu0
        %v564 = vadd.f32 %v458, %v563
        %v565 = vpop.f32.mrf.mxu0
        %v566 = vpop.f32.mrf.mxu0
        %v567 = vadd.f32 %v461, %v566
        %v568 = vpop.f32.mrf.mxu0
        %569 = vmatprep.mubr.bf16.mxu0 0
        %570 = vmatmul.mubr.bf16.gmra.mxu0 %v515
        %v571 = vpop.f32.mrf.mxu0
        %v572 = vadd.f32 %v466, %v571
        %v573 = vpop.f32.mrf.mxu0
        %v574 = vpop.f32.mrf.mxu0
        %v575 = vadd.f32 %v469, %v574
        %v576 = vpop.f32.mrf.mxu0
        %577 = vmatprep.mubr.bf16.mxu0 0
        %578 = vmatmul.mubr.bf16.gmra.mxu0 %v517
        %v579 = vpop.f32.mrf.mxu0
        %v580 = vadd.f32 %v474, %v579
        %v581 = vpop.f32.mrf.mxu0
        %v582 = vpop.f32.mrf.mxu0
        %v583 = vadd.f32 %v477, %v582
        %v584 = vpop.f32.mrf.mxu0
        %585 = vmatprep.mubr.bf16.mxu0 0
        %586 = vmatmul.mubr.bf16.gmra.mxu0 %v519
        %v587 = vpop.f32.mrf.mxu0
        %v588 = vadd.f32 %v482, %v587
        %v589 = vpop.f32.mrf.mxu0
        %v590 = vpop.f32.mrf.mxu0
        %v591 = vpop.f32.mrf.mxu0
        %592 = vdwg.mxu0
        %s593 = scalar_lea.vmem [#allocation6], 64
        %v594 = vld [vmem:[%s593] sm:$0xf]
        %v595 = vld [vmem:[%s593 + $0x4] sm:$0xf]
        %v596 = vld [vmem:[%s593 + $0x8] sm:$0xf]
        %v597 = vld [vmem:[%s593 + $0xc] sm:$0xf]
        %v598 = vld [vmem:[%s593 + $0x10] sm:$0xf]
        %v599 = vld [vmem:[%s593 + $0x14] sm:$0xf]
        %v600 = vld [vmem:[%s593 + $0x18] sm:$0xf]
        %v601 = vld [vmem:[%s593 + $0x1c] sm:$0xf]
        %vm607 = vcmask 1046528
        %v608 = vrot.slane %v314, 1
        %v609 = vrot.slane %v315, 1
        %v610 = vsel %vm607, %v608, %v609
        %v611 = vrot.slane %v316, 1
        %v612 = vsel %vm607, %v609, %v611
        %v613 = vrot.slane %v317, 1
        %v614 = vsel %vm607, %v611, %v613
        %v615 = vrot.slane %v318, 1
        %v616 = vsel %vm607, %v613, %v615
        %v625 = vunpack.c.l.b16 %v594
        %v626 = vunpack.c.l.b16 %v595
        %v627 = vunpack.c.l.b16 %v596
        %v628 = vunpack.c.l.b16 %v597
        %v629 = vunpack.c.l.b16 %v598
        %v630 = vunpack.c.l.b16 %v599
        %v631 = vunpack.c.l.b16 %v600
        %v632 = vunpack.c.l.b16 %v601
        %v633 = vpack.c.b16 %v626, %v625
        %v634 = vpack.c.b16 %v628, %v627
        %v635 = vpack.c.b16 %v630, %v629
        %v636 = vpack.c.b16 %v632, %v631
        %v642 = vsel %vm287, %v610, 0
        %v645 = vsel %vm287, %v612, 0
        %v648 = vsel %vm287, %v614, 0
        %v651 = vsel %vm287, %v616, 0
        %v654 = vsel %vm287, %v615, 0
        %656 = vmatprep.subr.bf16.mxu0 0
        %657 = vmatpush1.bf16.msra.mxu0 0
        %658 = vmatprep.subr.bf16.mxu0 0
        %659 = vmatpush1.bf16.msra.mxu0 0
        %660 = vmatprep.subr.bf16.mxu0 0
        %661 = vmatpush1.bf16.msra.mxu0 0
        %662 = vmatprep.subr.bf16.mxu0 0
        %663 = vmatpush1.bf16.msra.mxu0 0
        %664 = vmatprep.subr.bf16.mxu0 0
        %665 = vmatpush1.bf16.msra.mxu0 %v636
        %666 = vmatprep.subr.bf16.mxu0 0
        %667 = vmatpush1.bf16.msra.mxu0 %v635
        %668 = vmatprep.subr.bf16.mxu0 0
        %669 = vmatpush1.bf16.msra.mxu0 %v634
        %670 = vmatprep.subr.bf16.mxu0 0
        %671 = vmatpush1.bf16.msra.mxu0 %v633
        %672 = vmatprep.subr.bf16.mxu0 0
        %673 = vmatpush2.bf16.msra.mxu0 0
        %674 = vmatprep.subr.bf16.mxu0 0
        %675 = vmatpush2.bf16.msra.mxu0 0
        %676 = vmatprep.subr.bf16.mxu0 0
        %677 = vmatpush2.bf16.msra.mxu0 0
        %678 = vmatprep.subr.bf16.mxu0 0
        %679 = vmatpush2.bf16.msra.mxu0 0
        %680 = vmatprep.subr.bf16.mxu0 0
        %681 = vmatpush2.bf16.msra.mxu0 0
        %682 = vmatprep.subr.bf16.mxu0 0
        %683 = vmatpush2.bf16.msra.mxu0 0
        %684 = vmatprep.subr.bf16.mxu0 0
        %685 = vmatpush2.bf16.msra.mxu0 0
        %686 = vmatprep.subr.bf16.mxu0 0
        %687 = vmatpush2.bf16.msra.mxu0 0
        %688 = vmatprep.mubr.bf16.mxu0 0
        %689 = vmatmul.mubr.bf16.gmra.mxu0 %v642
        %v690 = vpop.f32.mrf.mxu0
        %v691 = vadd.f32 0.0, %v690
        %v692 = vpop.f32.mrf.mxu0
        %v693 = vpop.f32.mrf.mxu0
        %v694 = vadd.f32 0.0, %v693
        %v695 = vpop.f32.mrf.mxu0
        %696 = vmatprep.mubr.bf16.mxu0 0
        %697 = vmatmul.mubr.bf16.gmra.mxu0 %v645
        %v698 = vpop.f32.mrf.mxu0
        %v699 = vadd.f32 0.0, %v698
        %v700 = vpop.f32.mrf.mxu0
        %v701 = vpop.f32.mrf.mxu0
        %v702 = vadd.f32 0.0, %v701
        %v703 = vpop.f32.mrf.mxu0
        %704 = vmatprep.mubr.bf16.mxu0 0
        %705 = vmatmul.mubr.bf16.gmra.mxu0 %v648
        %v706 = vpop.f32.mrf.mxu0
        %v707 = vadd.f32 0.0, %v706
        %v708 = vpop.f32.mrf.mxu0
        %v709 = vpop.f32.mrf.mxu0
        %v710 = vadd.f32 0.0, %v709
        %v711 = vpop.f32.mrf.mxu0
        %712 = vmatprep.mubr.bf16.mxu0 0
        %713 = vmatmul.mubr.bf16.gmra.mxu0 %v651
        %v714 = vpop.f32.mrf.mxu0
        %v715 = vadd.f32 0.0, %v714
        %v716 = vpop.f32.mrf.mxu0
        %v717 = vpop.f32.mrf.mxu0
        %v718 = vadd.f32 0.0, %v717
        %v719 = vpop.f32.mrf.mxu0
        %720 = vmatprep.mubr.bf16.mxu0 0
        %721 = vmatmul.mubr.bf16.gmra.mxu0 %v654
        %v722 = vpop.f32.mrf.mxu0
        %v723 = vadd.f32 0.0, %v722
        %v724 = vpop.f32.mrf.mxu0
        %v725 = vpop.f32.mrf.mxu0
        %v726 = vpop.f32.mrf.mxu0
        %727 = vdwg.mxu0
        %v728 = vadd.f32 %v556, %v691
        %v729 = vadd.f32 %v559, %v694
        %v730 = vadd.f32 %v564, %v699
        %v731 = vadd.f32 %v567, %v702
        %v732 = vadd.f32 %v572, %v707
        %v733 = vadd.f32 %v575, %v710
        %v734 = vadd.f32 %v580, %v715
        %v735 = vadd.f32 %v583, %v718
        %v736 = vadd.f32 %v588, %v723
        %v737 = vld [vmem:[%s3] sm:$0x1]
        %v739 = vlaneseq
        %v740 = vshrl.u32 %v739, 7
        %v741 = vsub.s32 0, %v740
        %v742 = vrot.slane %v737, %v741
        %v744 = vadd.f32 %v728, %v742
        %v745 = vadd.f32 %v729, %v742
        %v746 = vadd.f32 %v730, %v742
        %v747 = vadd.f32 %v731, %v742
        %v748 = vadd.f32 %v732, %v742
        %v749 = vadd.f32 %v733, %v742
        %v750 = vadd.f32 %v734, %v742
        %v751 = vadd.f32 %v735, %v742
        %v752 = vadd.f32 %v736, %v742
        %v753 = vmax.f32 %v744, 0.0
        %v754 = vmax.f32 %v745, 0.0
        %v755 = vmax.f32 %v746, 0.0
        %v756 = vmax.f32 %v747, 0.0
        %v757 = vmax.f32 %v748, 0.0
        %v758 = vmax.f32 %v749, 0.0
        %v759 = vmax.f32 %v750, 0.0
        %v760 = vmax.f32 %v751, 0.0
        %v761 = vmax.f32 %v752, 0.0
        %762 = vst.msk [vmem:[#allocation2 + $0x1] sm:$0xff] %vm287, %v753
        %763 = vst.msk [vmem:[#allocation2 + $0x9] sm:$0xff] %vm287, %v754
        %vm764 = vcmask 523266
        %765 = vst.msk [vmem:[#allocation2 + $0x11] sm:$0xfc] %vm764, %v755
        %766 = vst.msk [vmem:[#allocation2 + $0x19] sm:$0xff] %vm287, %v756
        %vm767 = vcmask 517120
        %768 = vst.msk [vmem:[#allocation2 + $0x21] sm:$0x3] %vm767, %v757
        %vm769 = vcmask 523268
        %770 = vst.msk [vmem:[#allocation2 + $0x21] sm:$0xf0] %vm769, %v757
        %771 = vst.msk [vmem:[#allocation2 + $0x29] sm:$0xff] %vm287, %v758
        %vm772 = vcmask 519168
        %773 = vst.msk [vmem:[#allocation2 + $0x31] sm:$0xf] %vm772, %v759
        %vm774 = vcmask 523270
        %775 = vst.msk [vmem:[#allocation2 + $0x31] sm:$0xc0] %vm774, %v759
        %776 = vst.msk [vmem:[#allocation2 + $0x39] sm:$0xff] %vm287, %v760
        %vm777 = vcmask 521216
        %778 = vst.msk [vmem:[#allocation2 + $0x41] sm:$0x3f] %vm777, %v761
        %v779 = vld [vmem:[#allocation2] sm:$0xff]
        %v780 = vld [vmem:[#allocation2 + $0x8] sm:$0xff]
        %v781 = vld [vmem:[#allocation2 + $0x10] sm:$0xff]
        %v782 = vld [vmem:[#allocation2 + $0x18] sm:$0xff]
        %v783 = vld [vmem:[#allocation2 + $0x20] sm:$0xff]
        %v784 = vld [vmem:[#allocation2 + $0x28] sm:$0xff]
        %v785 = vld [vmem:[#allocation2 + $0x30] sm:$0xff]
        %v786 = vld [vmem:[#allocation2 + $0x38] sm:$0xff]
        %v787 = vld [vmem:[#allocation2 + $0x40] sm:$0xff]
        %v788 = vpack.c.bf16 %v780, %v779
        %v789 = vpack.c.bf16 %v782, %v781
        %v790 = vpack.c.bf16 %v784, %v783
        %v791 = vpack.c.bf16 %v786, %v785
        %v792 = vpack.c.bf16 %v787, %v787
        %v793 = vld [vmem:[#allocation8] sm:$0xf]
        %v794 = vld [vmem:[#allocation8 + $0x4] sm:$0xf]
        %v795 = vld [vmem:[#allocation8 + $0x8] sm:$0xf]
        %v796 = vld [vmem:[#allocation8 + $0xc] sm:$0xf]
        %v797 = vld [vmem:[#allocation8 + $0x10] sm:$0xf]
        %v798 = vld [vmem:[#allocation8 + $0x14] sm:$0xf]
        %v799 = vld [vmem:[#allocation8 + $0x18] sm:$0xf]
        %v800 = vld [vmem:[#allocation8 + $0x1c] sm:$0xf]
        %s801 = scalar_lea.vmem [#allocation8], 32
        %v802 = vld [vmem:[%s801] sm:$0xf]
        %v803 = vld [vmem:[%s801 + $0x4] sm:$0xf]
        %v804 = vld [vmem:[%s801 + $0x8] sm:$0xf]
        %v805 = vld [vmem:[%s801 + $0xc] sm:$0xf]
        %v806 = vld [vmem:[%s801 + $0x10] sm:$0xf]
        %v807 = vld [vmem:[%s801 + $0x14] sm:$0xf]
        %v808 = vld [vmem:[%s801 + $0x18] sm:$0xf]
        %v809 = vld [vmem:[%s801 + $0x1c] sm:$0xf]
        %v811 = vshrl.u32 %v788, 16
        %v813 = vshll.u32 %v788, 16
        %v815 = vrot.slane %v813, 1
        %v816 = vor.u32 %v811, %v815
        %v818 = vshll.u32 %v789, 16
        %v820 = vrot.slane %v818, 1
        %v821 = vsel %vm336, %v816, %v820
        %v822 = vshrl.u32 %v789, 16
        %v824 = vor.u32 %v822, %v820
        %v826 = vshll.u32 %v790, 16
        %v828 = vrot.slane %v826, 1
        %v829 = vsel %vm336, %v824, %v828
        %v830 = vshrl.u32 %v790, 16
        %v832 = vor.u32 %v830, %v828
        %v834 = vshll.u32 %v791, 16
        %v836 = vrot.slane %v834, 1
        %v837 = vsel %vm336, %v832, %v836
        %v838 = vshrl.u32 %v791, 16
        %v840 = vor.u32 %v838, %v836
        %v842 = vshll.u32 %v792, 16
        %v844 = vrot.slane %v842, 1
        %v845 = vsel %vm336, %v840, %v844
        %v846 = vshrl.u32 %v792, 16
        %v848 = vor.u32 %v846, %v844
        %v857 = vunpack.c.l.b16 %v802
        %v858 = vunpack.c.l.b16 %v803
        %v859 = vunpack.c.l.b16 %v804
        %v860 = vunpack.c.l.b16 %v805
        %v861 = vunpack.c.l.b16 %v806
        %v862 = vunpack.c.l.b16 %v807
        %v863 = vunpack.c.l.b16 %v808
        %v864 = vunpack.c.l.b16 %v809
        %v865 = vpack.c.b16 %v858, %v857
        %v866 = vpack.c.b16 %v860, %v859
        %v867 = vpack.c.b16 %v862, %v861
        %v868 = vpack.c.b16 %v864, %v863
        %v874 = vsel %vm287, %v821, 0
        %v877 = vsel %vm287, %v829, 0
        %v880 = vsel %vm287, %v837, 0
        %v883 = vsel %vm287, %v845, 0
        %v886 = vsel %vm287, %v848, 0
        %888 = vmatprep.subr.bf16.mxu0 0
        %889 = vmatpush1.bf16.msra.mxu0 0
        %890 = vmatprep.subr.bf16.mxu0 0
        %891 = vmatpush1.bf16.msra.mxu0 0
        %892 = vmatprep.subr.bf16.mxu0 0
        %893 = vmatpush1.bf16.msra.mxu0 0
        %894 = vmatprep.subr.bf16.mxu0 0
        %895 = vmatpush1.bf16.msra.mxu0 0
        %896 = vmatprep.subr.bf16.mxu0 0
        %897 = vmatpush1.bf16.msra.mxu0 %v868
        %898 = vmatprep.subr.bf16.mxu0 0
        %899 = vmatpush1.bf16.msra.mxu0 %v867
        %900 = vmatprep.subr.bf16.mxu0 0
        %901 = vmatpush1.bf16.msra.mxu0 %v866
        %902 = vmatprep.subr.bf16.mxu0 0
        %903 = vmatpush1.bf16.msra.mxu0 %v865
        %904 = vmatprep.subr.bf16.mxu0 0
        %905 = vmatpush2.bf16.msra.mxu0 0
        %906 = vmatprep.subr.bf16.mxu0 0
        %907 = vmatpush2.bf16.msra.mxu0 0
        %908 = vmatprep.subr.bf16.mxu0 0
        %909 = vmatpush2.bf16.msra.mxu0 0
        %910 = vmatprep.subr.bf16.mxu0 0
        %911 = vmatpush2.bf16.msra.mxu0 0
        %912 = vmatprep.subr.bf16.mxu0 0
        %913 = vmatpush2.bf16.msra.mxu0 0
        %914 = vmatprep.subr.bf16.mxu0 0
        %915 = vmatpush2.bf16.msra.mxu0 0
        %916 = vmatprep.subr.bf16.mxu0 0
        %917 = vmatpush2.bf16.msra.mxu0 0
        %918 = vmatprep.subr.bf16.mxu0 0
        %919 = vmatpush2.bf16.msra.mxu0 0
        %920 = vmatprep.mubr.bf16.mxu0 0
        %921 = vmatmul.mubr.bf16.gmra.mxu0 %v874
        %v922 = vpop.f32.mrf.mxu0
        %v923 = vadd.f32 0.0, %v922
        %v924 = vpop.f32.mrf.mxu0
        %v925 = vpop.f32.mrf.mxu0
        %v926 = vadd.f32 0.0, %v925
        %v927 = vpop.f32.mrf.mxu0
        %928 = vmatprep.mubr.bf16.mxu0 0
        %929 = vmatmul.mubr.bf16.gmra.mxu0 %v877
        %v930 = vpop.f32.mrf.mxu0
        %v931 = vadd.f32 0.0, %v930
        %v932 = vpop.f32.mrf.mxu0
        %v933 = vpop.f32.mrf.mxu0
        %v934 = vadd.f32 0.0, %v933
        %v935 = vpop.f32.mrf.mxu0
        %936 = vmatprep.mubr.bf16.mxu0 0
        %937 = vmatmul.mubr.bf16.gmra.mxu0 %v880
        %v938 = vpop.f32.mrf.mxu0
        %v939 = vadd.f32 0.0, %v938
        %v940 = vpop.f32.mrf.mxu0
        %v941 = vpop.f32.mrf.mxu0
        %v942 = vadd.f32 0.0, %v941
        %v943 = vpop.f32.mrf.mxu0
        %944 = vmatprep.mubr.bf16.mxu0 0
        %945 = vmatmul.mubr.bf16.gmra.mxu0 %v883
        %v946 = vpop.f32.mrf.mxu0
        %v947 = vadd.f32 0.0, %v946
        %v948 = vpop.f32.mrf.mxu0
        %v949 = vpop.f32.mrf.mxu0
        %v950 = vadd.f32 0.0, %v949
        %v951 = vpop.f32.mrf.mxu0
        %952 = vmatprep.mubr.bf16.mxu0 0
        %953 = vmatmul.mubr.bf16.gmra.mxu0 %v886
        %v954 = vpop.f32.mrf.mxu0
        %v955 = vadd.f32 0.0, %v954
        %v956 = vpop.f32.mrf.mxu0
        %v957 = vpop.f32.mrf.mxu0
        %v958 = vpop.f32.mrf.mxu0
        %959 = vdwg.mxu0
        %v968 = vunpack.c.l.b16 %v793
        %v969 = vunpack.c.l.b16 %v794
        %v970 = vunpack.c.l.b16 %v795
        %v971 = vunpack.c.l.b16 %v796
        %v972 = vunpack.c.l.b16 %v797
        %v973 = vunpack.c.l.b16 %v798
        %v974 = vunpack.c.l.b16 %v799
        %v975 = vunpack.c.l.b16 %v800
        %v976 = vpack.c.b16 %v969, %v968
        %v977 = vpack.c.b16 %v971, %v970
        %v978 = vpack.c.b16 %v973, %v972
        %v979 = vpack.c.b16 %v975, %v974
        %v984 = vsel %vm287, %v788, 0
        %v986 = vsel %vm287, %v789, 0
        %v988 = vsel %vm287, %v790, 0
        %v990 = vsel %vm287, %v791, 0
        %v992 = vsel %vm287, %v792, 0
        %994 = vmatprep.subr.bf16.mxu0 0
        %995 = vmatpush1.bf16.msra.mxu0 0
        %996 = vmatprep.subr.bf16.mxu0 0
        %997 = vmatpush1.bf16.msra.mxu0 0
        %998 = vmatprep.subr.bf16.mxu0 0
        %999 = vmatpush1.bf16.msra.mxu0 0
        %1000 = vmatprep.subr.bf16.mxu0 0
        %1001 = vmatpush1.bf16.msra.mxu0 0
        %1002 = vmatprep.subr.bf16.mxu0 0
        %1003 = vmatpush1.bf16.msra.mxu0 %v979
        %1004 = vmatprep.subr.bf16.mxu0 0
        %1005 = vmatpush1.bf16.msra.mxu0 %v978
        %1006 = vmatprep.subr.bf16.mxu0 0
        %1007 = vmatpush1.bf16.msra.mxu0 %v977
        %1008 = vmatprep.subr.bf16.mxu0 0
        %1009 = vmatpush1.bf16.msra.mxu0 %v976
        %1010 = vmatprep.subr.bf16.mxu0 0
        %1011 = vmatpush2.bf16.msra.mxu0 0
        %1012 = vmatprep.subr.bf16.mxu0 0
        %1013 = vmatpush2.bf16.msra.mxu0 0
        %1014 = vmatprep.subr.bf16.mxu0 0
        %1015 = vmatpush2.bf16.msra.mxu0 0
        %1016 = vmatprep.subr.bf16.mxu0 0
        %1017 = vmatpush2.bf16.msra.mxu0 0
        %1018 = vmatprep.subr.bf16.mxu0 0
        %1019 = vmatpush2.bf16.msra.mxu0 0
        %1020 = vmatprep.subr.bf16.mxu0 0
        %1021 = vmatpush2.bf16.msra.mxu0 0
        %1022 = vmatprep.subr.bf16.mxu0 0
        %1023 = vmatpush2.bf16.msra.mxu0 0
        %1024 = vmatprep.subr.bf16.mxu0 0
        %1025 = vmatpush2.bf16.msra.mxu0 0
        %1026 = vmatprep.mubr.bf16.mxu0 0
        %1027 = vmatmul.mubr.bf16.gmra.mxu0 %v984
        %v1028 = vpop.f32.mrf.mxu0
        %v1029 = vadd.f32 %v923, %v1028
        %v1030 = vpop.f32.mrf.mxu0
        %v1031 = vpop.f32.mrf.mxu0
        %v1032 = vadd.f32 %v926, %v1031
        %v1033 = vpop.f32.mrf.mxu0
        %1034 = vmatprep.mubr.bf16.mxu0 0
        %1035 = vmatmul.mubr.bf16.gmra.mxu0 %v986
        %v1036 = vpop.f32.mrf.mxu0
        %v1037 = vadd.f32 %v931, %v1036
        %v1038 = vpop.f32.mrf.mxu0
        %v1039 = vpop.f32.mrf.mxu0
        %v1040 = vadd.f32 %v934, %v1039
        %v1041 = vpop.f32.mrf.mxu0
        %1042 = vmatprep.mubr.bf16.mxu0 0
        %1043 = vmatmul.mubr.bf16.gmra.mxu0 %v988
        %v1044 = vpop.f32.mrf.mxu0
        %v1045 = vadd.f32 %v939, %v1044
        %v1046 = vpop.f32.mrf.mxu0
        %v1047 = vpop.f32.mrf.mxu0
        %v1048 = vadd.f32 %v942, %v1047
        %v1049 = vpop.f32.mrf.mxu0
        %1050 = vmatprep.mubr.bf16.mxu0 0
        %1051 = vmatmul.mubr.bf16.gmra.mxu0 %v990
        %v1052 = vpop.f32.mrf.mxu0
        %v1053 = vadd.f32 %v947, %v1052
        %v1054 = vpop.f32.mrf.mxu0
        %v1055 = vpop.f32.mrf.mxu0
        %v1056 = vadd.f32 %v950, %v1055
        %v1057 = vpop.f32.mrf.mxu0
        %1058 = vmatprep.mubr.bf16.mxu0 0
        %1059 = vmatmul.mubr.bf16.gmra.mxu0 %v992
        %v1060 = vpop.f32.mrf.mxu0
        %v1061 = vadd.f32 %v955, %v1060
        %v1062 = vpop.f32.mrf.mxu0
        %v1063 = vpop.f32.mrf.mxu0
        %v1064 = vpop.f32.mrf.mxu0
        %1065 = vdwg.mxu0
        %s1066 = scalar_lea.vmem [#allocation8], 64
        %v1067 = vld [vmem:[%s1066] sm:$0xf]
        %v1068 = vld [vmem:[%s1066 + $0x4] sm:$0xf]
        %v1069 = vld [vmem:[%s1066 + $0x8] sm:$0xf]
        %v1070 = vld [vmem:[%s1066 + $0xc] sm:$0xf]
        %v1071 = vld [vmem:[%s1066 + $0x10] sm:$0xf]
        %v1072 = vld [vmem:[%s1066 + $0x14] sm:$0xf]
        %v1073 = vld [vmem:[%s1066 + $0x18] sm:$0xf]
        %v1074 = vld [vmem:[%s1066 + $0x1c] sm:$0xf]
        %v1080 = vrot.slane %v788, 1
        %v1081 = vrot.slane %v789, 1
        %v1082 = vsel %vm607, %v1080, %v1081
        %v1083 = vrot.slane %v790, 1
        %v1084 = vsel %vm607, %v1081, %v1083
        %v1085 = vrot.slane %v791, 1
        %v1086 = vsel %vm607, %v1083, %v1085
        %v1087 = vrot.slane %v792, 1
        %v1088 = vsel %vm607, %v1085, %v1087
        %v1097 = vunpack.c.l.b16 %v1067
        %v1098 = vunpack.c.l.b16 %v1068
        %v1099 = vunpack.c.l.b16 %v1069
        %v1100 = vunpack.c.l.b16 %v1070
        %v1101 = vunpack.c.l.b16 %v1071
        %v1102 = vunpack.c.l.b16 %v1072
        %v1103 = vunpack.c.l.b16 %v1073
        %v1104 = vunpack.c.l.b16 %v1074
        %v1105 = vpack.c.b16 %v1098, %v1097
        %v1106 = vpack.c.b16 %v1100, %v1099
        %v1107 = vpack.c.b16 %v1102, %v1101
        %v1108 = vpack.c.b16 %v1104, %v1103
        %v1114 = vsel %vm287, %v1082, 0
        %v1117 = vsel %vm287, %v1084, 0
        %v1120 = vsel %vm287, %v1086, 0
        %v1123 = vsel %vm287, %v1088, 0
        %v1126 = vsel %vm287, %v1087, 0
        %1128 = vmatprep.subr.bf16.mxu0 0
        %1129 = vmatpush1.bf16.msra.mxu0 0
        %1130 = vmatprep.subr.bf16.mxu0 0
        %1131 = vmatpush1.bf16.msra.mxu0 0
        %1132 = vmatprep.subr.bf16.mxu0 0
        %1133 = vmatpush1.bf16.msra.mxu0 0
        %1134 = vmatprep.subr.bf16.mxu0 0
        %1135 = vmatpush1.bf16.msra.mxu0 0
        %1136 = vmatprep.subr.bf16.mxu0 0
        %1137 = vmatpush1.bf16.msra.mxu0 %v1108
        %1138 = vmatprep.subr.bf16.mxu0 0
        %1139 = vmatpush1.bf16.msra.mxu0 %v1107
        %1140 = vmatprep.subr.bf16.mxu0 0
        %1141 = vmatpush1.bf16.msra.mxu0 %v1106
        %1142 = vmatprep.subr.bf16.mxu0 0
        %1143 = vmatpush1.bf16.msra.mxu0 %v1105
        %1144 = vmatprep.subr.bf16.mxu0 0
        %1145 = vmatpush2.bf16.msra.mxu0 0
        %1146 = vmatprep.subr.bf16.mxu0 0
        %1147 = vmatpush2.bf16.msra.mxu0 0
        %1148 = vmatprep.subr.bf16.mxu0 0
        %1149 = vmatpush2.bf16.msra.mxu0 0
        %1150 = vmatprep.subr.bf16.mxu0 0
        %1151 = vmatpush2.bf16.msra.mxu0 0
        %1152 = vmatprep.subr.bf16.mxu0 0
        %1153 = vmatpush2.bf16.msra.mxu0 0
        %1154 = vmatprep.subr.bf16.mxu0 0
        %1155 = vmatpush2.bf16.msra.mxu0 0
        %1156 = vmatprep.subr.bf16.mxu0 0
        %1157 = vmatpush2.bf16.msra.mxu0 0
        %1158 = vmatprep.subr.bf16.mxu0 0
        %1159 = vmatpush2.bf16.msra.mxu0 0
        %1160 = vmatprep.mubr.bf16.mxu0 0
        %1161 = vmatmul.mubr.bf16.gmra.mxu0 %v1114
        %v1162 = vpop.f32.mrf.mxu0
        %v1163 = vadd.f32 0.0, %v1162
        %v1164 = vpop.f32.mrf.mxu0
        %v1165 = vpop.f32.mrf.mxu0
        %v1166 = vadd.f32 0.0, %v1165
        %v1167 = vpop.f32.mrf.mxu0
        %1168 = vmatprep.mubr.bf16.mxu0 0
        %1169 = vmatmul.mubr.bf16.gmra.mxu0 %v1117
        %v1170 = vpop.f32.mrf.mxu0
        %v1171 = vadd.f32 0.0, %v1170
        %v1172 = vpop.f32.mrf.mxu0
        %v1173 = vpop.f32.mrf.mxu0
        %v1174 = vadd.f32 0.0, %v1173
        %v1175 = vpop.f32.mrf.mxu0
        %1176 = vmatprep.mubr.bf16.mxu0 0
        %1177 = vmatmul.mubr.bf16.gmra.mxu0 %v1120
        %v1178 = vpop.f32.mrf.mxu0
        %v1179 = vadd.f32 0.0, %v1178
        %v1180 = vpop.f32.mrf.mxu0
        %v1181 = vpop.f32.mrf.mxu0
        %v1182 = vadd.f32 0.0, %v1181
        %v1183 = vpop.f32.mrf.mxu0
        %1184 = vmatprep.mubr.bf16.mxu0 0
        %1185 = vmatmul.mubr.bf16.gmra.mxu0 %v1123
        %v1186 = vpop.f32.mrf.mxu0
        %v1187 = vadd.f32 0.0, %v1186
        %v1188 = vpop.f32.mrf.mxu0
        %v1189 = vpop.f32.mrf.mxu0
        %v1190 = vadd.f32 0.0, %v1189
        %v1191 = vpop.f32.mrf.mxu0
        %1192 = vmatprep.mubr.bf16.mxu0 0
        %1193 = vmatmul.mubr.bf16.gmra.mxu0 %v1126
        %v1194 = vpop.f32.mrf.mxu0
        %v1195 = vadd.f32 0.0, %v1194
        %v1196 = vpop.f32.mrf.mxu0
        %v1197 = vpop.f32.mrf.mxu0
        %v1198 = vpop.f32.mrf.mxu0
        %1199 = vdwg.mxu0
        %v1200 = vadd.f32 %v1029, %v1163
        %v1201 = vadd.f32 %v1032, %v1166
        %v1202 = vadd.f32 %v1037, %v1171
        %v1203 = vadd.f32 %v1040, %v1174
        %v1204 = vadd.f32 %v1045, %v1179
        %v1205 = vadd.f32 %v1048, %v1182
        %v1206 = vadd.f32 %v1053, %v1187
        %v1207 = vadd.f32 %v1056, %v1190
        %v1208 = vadd.f32 %v1061, %v1195
        %v1209 = vld [vmem:[%s4] sm:$0x1]
        %v1211 = vlaneseq
        %v1212 = vshrl.u32 %v1211, 7
        %v1213 = vsub.s32 0, %v1212
        %v1214 = vrot.slane %v1209, %v1213
        %v1216 = vadd.f32 %v1200, %v1214
        %v1217 = vadd.f32 %v1201, %v1214
        %v1218 = vadd.f32 %v1202, %v1214
        %v1219 = vadd.f32 %v1203, %v1214
        %v1220 = vadd.f32 %v1204, %v1214
        %v1221 = vadd.f32 %v1205, %v1214
        %v1222 = vadd.f32 %v1206, %v1214
        %v1223 = vadd.f32 %v1207, %v1214
        %v1224 = vadd.f32 %v1208, %v1214
        %v1225 = vld [vmem:[%s238] sm:$0xff]
        %v1226 = vld [vmem:[%s238 + $0x8] sm:$0xff]
        %v1227 = vadd.f32 %v1216, %v1225
        %v1228 = vadd.f32 %v1217, %v1226
        %v1229 = vmax.f32 %v1227, 0.0
        %v1230 = vmax.f32 %v1228, 0.0
        %1231 = vst.msk [vmem:[%s272] sm:$0xff] %vm287, %v1229
        %1232 = vst.msk [vmem:[%s272 + $0x8] sm:$0xff] %vm287, %v1230
        %v1233 = vld [vmem:[%s290] sm:$0xff]
        %v1234 = vld [vmem:[%s290 + $0x8] sm:$0xff]
        %vm1237 = vcmask 1041408
        %v1238 = vrot.slane %v1233, 6
        %v1239 = vrot.slane %v1234, 6
        %v1240 = vsel %vm1237, %v1238, %v1239
        %v1244 = vadd.f32 %v1218, %v1238
        %v1245 = vadd.f32 %v1219, %v1240
        %v1246 = vadd.f32 %v1220, %v1239
        %v1247 = vmax.f32 %v1244, 0.0
        %v1248 = vmax.f32 %v1245, 0.0
        %v1249 = vmax.f32 %v1246, 0.0
        %s1250 = scalar_lea.vmem %s272, 16 [#allocation9]
        %1251 = vst.msk [vmem:[%s1250 - $0x2] sm:$0xfc] %vm764, %v1247
        %1252 = vst.msk [vmem:[%s1250 + $0x6] sm:$0xff] %vm287, %v1248
        %1253 = vst.msk [vmem:[%s1250 + $0xe] sm:$0x3] %vm767, %v1249
        %v1254 = vld [vmem:[%s295] sm:$0xff]
        %v1255 = vld [vmem:[%s295 + $0x8] sm:$0xff]
        %vm1258 = vcmask 1043456
        %v1259 = vrot.slane %v1254, 4
        %v1260 = vrot.slane %v1255, 4
        %v1261 = vsel %vm1258, %v1259, %v1260
        %v1265 = vadd.f32 %v1220, %v1259
        %v1266 = vadd.f32 %v1221, %v1261
        %v1267 = vadd.f32 %v1222, %v1260
        %v1268 = vmax.f32 %v1265, 0.0
        %v1269 = vmax.f32 %v1266, 0.0
        %v1270 = vmax.f32 %v1267, 0.0
        %s1271 = scalar_lea.vmem %s272, 32 [#allocation9]
        %1272 = vst.msk [vmem:[%s1271 - $0x4] sm:$0xf0] %vm769, %v1268
        %1273 = vst.msk [vmem:[%s1271 + $0x4] sm:$0xff] %vm287, %v1269
        %1274 = vst.msk [vmem:[%s1271 + $0xc] sm:$0xf] %vm772, %v1270
        %v1275 = vld [vmem:[%s300] sm:$0xff]
        %v1276 = vld [vmem:[%s300 + $0x8] sm:$0xff]
        %vm1279 = vcmask 1045504
        %v1280 = vrot.slane %v1275, 2
        %v1281 = vrot.slane %v1276, 2
        %v1282 = vsel %vm1279, %v1280, %v1281
        %v1286 = vadd.f32 %v1222, %v1280
        %v1287 = vadd.f32 %v1223, %v1282
        %v1288 = vadd.f32 %v1224, %v1281
        %v1289 = vmax.f32 %v1286, 0.0
        %v1290 = vmax.f32 %v1287, 0.0
        %v1291 = vmax.f32 %v1288, 0.0
        %s1292 = scalar_lea.vmem %s272, 48 [#allocation9]
        %1293 = vst.msk [vmem:[%s1292 - $0x6] sm:$0xc0] %vm774, %v1289
        %1294 = vst.msk [vmem:[%s1292 + $0x2] sm:$0xff] %vm287, %v1290
        %1295 = vst.msk [vmem:[%s1292 + $0xa] sm:$0x3f] %vm777, %v1291
        %s1296 = sand.u32 %s141, 1
        %s1297 = scalar_lea.sflag [#allocation5], %s1296
        %s1298 = sand.u32 %s141, 1
        %s1299 = smul.addr %s1298, 64
        %s1300 = scalar_lea.vmem [#allocation9], %s1299
        // Predicated region
        $region53: #{basic_block_forward.1} parent=39 // pred_check
          %p1301 = pneg %p151
        $region54: #{basic_block_forward.1} parent=39 // pred_check_branch
          %1303 = sbr.rel (%p1301) target = $region56
        $region55: #{basic_block_forward.1} parent=39 // pred_region
          %s1304 = smul.u32 4, %s23
          %s1306 = ssub.s32 1024, 1024
          %1307 = vsyncadd %s1297, %s1306
          %s1308 = smul.addr %s1304, 2
          %s1309 = smul.addr %s1308, 128
          %s1310 = scalar_lea.hbm %s5, %s1309
          %s1311 = sshll.u32 %s1300, 4
          %s1312 = int_to_ptr.vmem [resolvable:$true] %s1311
          %1317 = dma.vmem_to_hbm [thread:$0]  %s1312, 1024, %s1310, %s1297, 128, 128, 8
        $region56: #{basic_block_forward.1} parent=39 // pred_fallthru
          _
      $region40: #{basic_block_forward.1} parent=5 // pred_fallthru
        _
      %p1318 = scmp.le.s32.totalorder 2, %s18
      // Predicated region
      $region57: #{basic_block_forward.1} parent=5 // pred_check
        %p1319 = pneg %p1318
      $region58: #{basic_block_forward.1} parent=5 // pred_check_branch
        %1321 = sbr.rel (%p1319) target = $region60
      $region59: #{basic_block_forward.1} parent=5 // pred_region
        %s1322 = ssub.s32 %s18, 2
        // Predicated region
        $region61: #{basic_block_forward.1} parent=59 // pred_check
          %p1323 = pneg %p157
        $region62: #{basic_block_forward.1} parent=59 // pred_check_branch
          %1325 = sbr.rel (%p1323) target = $region64
        $region63: #{basic_block_forward.1} parent=59 // pred_region
          %s1326 = sand.u32 %s142, 1
          %s1327 = scalar_lea.sflag [#allocation5], %s1326
          %s1328 = sand.u32 %s142, 1
          %s1329 = smul.addr %s1328, 64
          %s1330 = scalar_lea.vmem [#allocation9], %s1329
          %1331 = dma.done %s1327, 1024
        $region64: #{basic_block_forward.1} parent=59 // pred_fallthru
          _
      $region60: #{basic_block_forward.1} parent=5 // pred_fallthru
        _
    $region6: #{basic_block_forward.1} parent=1 // loop_footer
      %s22 = sadd.s32 1, %s18
    $region7: #{basic_block_forward.1} parent=1 // loop_footer_branch
      %17 = sbr.rel target = $region3
    $region8: #{basic_block_forward.1} parent=1 // loop_exit
      _
    %1332 = vsyncpa [#allocation4], 1
    %s1333 = scalar_lea.sflag [#allocation4], 1
    %1334 = vsyncpa %s1333, 1
    %1335 = vsyncpa [#allocation7], 1
    %1336 = vsyncpa [#allocation5], 1
    %s1337 = scalar_lea.sflag [#allocation5], 1
    %1338 = vsyncpa %s1337, 1

</llo_original>
